<compile_context>
chip_gen: v5e
topology: v5e:2x2
jax: 0.10.0
libtpu: 0.0.40
codegen_flags: <defaults>
</compile_context>

<pallas_src>
import jax
import jax.numpy as jnp
import numpy as np
from jax.experimental import pallas as pl
from jax.experimental.pallas import tpu as pltpu


def _round_up(x, m):
    return ((x + m - 1) // m) * m


def iqn_kernel(states_ref, tau_ref, ang_ref,
               w1_ref, b1_ref, w2_ref, b2_ref,
               wq_ref, bq_ref,
               wv1_ref, bv1_ref, wv2_ref, bv2_ref,
               out_ref):
    f32 = jnp.float32
    bf16 = jnp.bfloat16

    rb = states_ref.shape[0]        # unique state rows in this tile
    rt = tau_ref.shape[0]           # output rows in this tile (= rb * n_q)
    n_q = rt // rb                  # quantiles per state (static)
    H = w1_ref.shape[1]

    # ---- feature_net on UNIQUE state rows only: (rb, S) -> (rb, H)
    x = states_ref[...]                                            # bf16
    sf = jnp.dot(x, w1_ref[...], preferred_element_type=f32) + b1_ref[...]
    sf = jnp.maximum(sf, 0.0)
    sf = jnp.dot(sf.astype(bf16), w2_ref[...],
                 preferred_element_type=f32) + b2_ref[...]
    sf = jnp.maximum(sf, 0.0)                                      # (rb, H) f32

    # ---- replicate each state-feature row n_q times (sublane broadcast;
    #      reshape is a pure view when n_q is a multiple of 8).  Row order is
    #      b-major: global row = b * N + n, matching tau.
    if n_q > 1:
        sf_rep = jnp.broadcast_to(sf[:, None, :], (rb, n_q, H)).reshape(rt, H)
    else:
        sf_rep = sf                                                # (rt, H)

    # ---- cosine quantile embedding: cos(pi * i * tau); angles precomputed.
    emb = jnp.cos(tau_ref[...] * ang_ref[...])                     # (rt, E) f32
    qe = jnp.dot(emb.astype(bf16), wq_ref[...],
                 preferred_element_type=f32) + bq_ref[...]         # (rt, H)

    # ---- elementwise combine
    combined = sf_rep * qe

    # ---- value_net: Linear -> ReLU -> Linear, narrow (rt, A) output
    h = jnp.dot(combined.astype(bf16), wv1_ref[...],
                preferred_element_type=f32) + bv1_ref[...]
    h = jnp.maximum(h, 0.0)
    out_ref[...] = jnp.dot(h.astype(bf16), wv2_ref[...],
                           preferred_element_type=f32) + bv2_ref[...]


def init_params(key, state_size, action_size, embedding_dim, hidden_size):
    """Deterministic synthetic params (PyTorch-Linear-style uniform fan_in init)."""
    def linear(k, fan_in, fan_out):
        kw, kb = jax.random.split(k)
        bound = 1.0 / np.sqrt(fan_in)
        w = jax.random.uniform(kw, (fan_in, fan_out), jnp.float32, -bound, bound)
        b = jax.random.uniform(kb, (1, fan_out), jnp.float32, -bound, bound)
        return w, b

    keys = jax.random.split(key, 5)
    w1, b1 = linear(keys[0], state_size, hidden_size)      # feature_net[0]
    w2, b2 = linear(keys[1], hidden_size, hidden_size)     # feature_net[2]
    wq, bq = linear(keys[2], embedding_dim, hidden_size)   # quantile_embedding
    wv1, bv1 = linear(keys[3], hidden_size, hidden_size)   # value_net[0]
    wv2, bv2 = linear(keys[4], hidden_size, action_size)   # value_net[2]
    return dict(w1=w1, b1=b1, w2=w2, b2=b2, wq=wq, bq=bq,
                wv1=wv1, bv1=bv1, wv2=wv2, bv2=bv2)


def iqn_forward(states, quantiles, params, embedding_dim, target_rows=1024):
    B, S = states.shape
    _, N = quantiles.shape
    H = params["w1"].shape[1]
    A = params["wv2"].shape[1]
    E = embedding_dim
    BN = B * N

    # ---- wrapper-side prep (tiny, off the kernel's critical path) ----------
    # Hoisted cosine-angle constants pi*(i+1), i = 0..E-1.
    ang = (np.pi * jnp.arange(1, E + 1, dtype=jnp.float32)).reshape(1, E)

    # bf16 weights for MXU-native matmuls; biases stay f32.
    w1 = params["w1"].astype(jnp.bfloat16)
    w2 = params["w2"].astype(jnp.bfloat16)
    wq = params["wq"].astype(jnp.bfloat16)
    wv1 = params["wv1"].astype(jnp.bfloat16)
    wv2 = params["wv2"].astype(jnp.bfloat16)

    dedup = (N % 8 == 0)
    if dedup:
        # rb unique states per tile; each yields N output rows (rt = rb * N).
        rb = min(_round_up(B, 8),
                 max(8, _round_up(max(target_rows // N, 1), 8)))
        b_pad = _round_up(B, rb)
        rt = rb * N
        rows = b_pad * N
        x = states.astype(jnp.bfloat16)
        q = quantiles.astype(jnp.float32)
        if b_pad != B:
            x = jnp.pad(x, ((0, b_pad - B), (0, 0)))
            q = jnp.pad(q, ((0, b_pad - B), (0, 0)))
        tau = q.reshape(rows, 1)
        grid = (b_pad // rb,)
    else:
        # Fallback: replicate states per quantile in the wrapper (b-major).
        rt = min(_round_up(target_rows, 8), _round_up(BN, 8))
        rows = _round_up(BN, rt)
        rb = rt
        x = jnp.repeat(states.astype(jnp.bfloat16), N, axis=0)
        tau = quantiles.astype(jnp.float32).reshape(BN, 1)
        if rows != BN:
            x = jnp.pad(x, ((0, rows - BN), (0, 0)))
            tau = jnp.pad(tau, ((0, rows - BN), (0, 0)))
        grid = (rows // rt,)

    def row_spec(r, c):
        return pl.BlockSpec((r, c), lambda i: (i, 0))

    def full(shp):
        # Constant-index full blocks: weights stay VMEM-resident across steps.
        return pl.BlockSpec(shp, lambda i: (0, 0))

    out = pl.pallas_call(
        iqn_kernel,
        grid=grid,
        out_shape=jax.ShapeDtypeStruct((rows, A), jnp.float32),
        in_specs=[
            row_spec(rb, S), row_spec(rt, 1), full((1, E)),
            full((S, H)), full((1, H)),
            full((H, H)), full((1, H)),
            full((E, H)), full((1, H)),
            full((H, H)), full((1, H)),
            full((H, A)), full((1, A)),
        ],
        out_specs=row_spec(rt, A),
        compiler_params=pltpu.CompilerParams(
            dimension_semantics=("parallel",),   # megacore / 2-TC sharding
            vmem_limit_bytes=40 * 1024 * 1024,   # > v5e default, < v7x 64 MiB
        ),
    )(x, tau, ang,
      w1, params["b1"], w2, params["b2"],
      wq, params["bq"],
      wv1, params["bv1"], wv2, params["bv2"])

    return out[:BN].reshape(B, N, A)


def iqn_reference(states, quantiles, params, embedding_dim):
    """Pure-JAX reference mirroring the PyTorch forward (bf16 matmul weights,
    f32 accumulation, same numerics as the kernel)."""
    B, N = quantiles.shape

    def mm(a, w):
        return jnp.dot(a.astype(jnp.bfloat16), w.astype(jnp.bfloat16),
                       preferred_element_type=jnp.float32)

    sf = jnp.maximum(mm(states, params["w1"]) + params["b1"], 0.0)
    sf = jnp.maximum(mm(sf, params["w2"]) + params["b2"], 0.0)          # (B, H)
    idx = jnp.arange(1, embedding_dim + 1, dtype=jnp.float32).reshape(1, 1, -1)
    emb = jnp.cos(quantiles[:, :, None] * (np.float32(np.pi) * idx))    # (B, N, E)
    qe = mm(emb.reshape(B * N, embedding_dim), params["wq"]) + params["bq"]
    combined = jnp.repeat(sf, N, axis=0) * qe                           # (B*N, H)
    h = jnp.maximum(mm(combined, params["wv1"]) + params["bv1"], 0.0)
    out = mm(h, params["wv2"]) + params["bv2"]
    return out.reshape(B, N, -1)


if __name__ == "__main__":
    # Small shapes consistent with the module's forward.
    B, N = 2, 8                 # batch, num_quantiles
    S, A = 16, 4                # state_size, action_size
    E, H = 64, 128              # embedding_dim, hidden_size

    key = jax.random.PRNGKey(0)
    k_s, k_q, k_p = jax.random.split(key, 3)
    states = jax.random.normal(k_s, (B, S), jnp.float32)
    quantiles = jax.random.uniform(k_q, (B, N), jnp.float32)
    params = init_params(k_p, S, A, E, H)

    out = iqn_forward(states, quantiles, params, E)
    out = jax.block_until_ready(out)

    ref = iqn_reference(states, quantiles, params, E)
    assert out.shape == (B, N, A)
    np.testing.assert_allclose(np.asarray(out), np.asarray(ref), rtol=1e-2, atol=1e-2)

    print("KERNEL_OK")
</pallas_src>

<mosaic_0001>
module attributes {stable_mosaic.version = 11 : i64} {
  func.func @iqn_kernel(%arg0: i32, %arg1: memref<8x16xbf16, #tpu.memory_space<vmem>>, %arg2: memref<64x1xf32, #tpu.memory_space<vmem>>, %arg3: memref<1x64xf32, #tpu.memory_space<vmem>>, %arg4: memref<16x128xbf16, #tpu.memory_space<vmem>>, %arg5: memref<1x128xf32, #tpu.memory_space<vmem>>, %arg6: memref<128x128xbf16, #tpu.memory_space<vmem>>, %arg7: memref<1x128xf32, #tpu.memory_space<vmem>>, %arg8: memref<64x128xbf16, #tpu.memory_space<vmem>>, %arg9: memref<1x128xf32, #tpu.memory_space<vmem>>, %arg10: memref<128x128xbf16, #tpu.memory_space<vmem>>, %arg11: memref<1x128xf32, #tpu.memory_space<vmem>>, %arg12: memref<128x4xbf16, #tpu.memory_space<vmem>>, %arg13: memref<1x4xf32, #tpu.memory_space<vmem>>, %arg14: memref<64x4xf32, #tpu.memory_space<vmem>>) attributes {dimension_semantics = [#tpu.dimension_semantics<parallel>], iteration_bounds = array<i64: 1>, scalar_prefetch = 0 : i64, scratch_operands = 0 : i64, tpu.core_type = #tpu.core_type<tc>, window_params = [{transform_indices = @transform_0, window_bounds = array<i64: 8, 16>}, {transform_indices = @transform_1, window_bounds = array<i64: 64, 1>}, {pipeline_mode = #tpu.pipeline_mode<synchronous>, transform_indices = @transform_2, window_bounds = array<i64: 1, 64>}, {pipeline_mode = #tpu.pipeline_mode<synchronous>, transform_indices = @transform_3, window_bounds = array<i64: 16, 128>}, {pipeline_mode = #tpu.pipeline_mode<synchronous>, transform_indices = @transform_4, window_bounds = array<i64: 1, 128>}, {pipeline_mode = #tpu.pipeline_mode<synchronous>, transform_indices = @transform_5, window_bounds = array<i64: 128, 128>}, {pipeline_mode = #tpu.pipeline_mode<synchronous>, transform_indices = @transform_6, window_bounds = array<i64: 1, 128>}, {pipeline_mode = #tpu.pipeline_mode<synchronous>, transform_indices = @transform_7, window_bounds = array<i64: 64, 128>}, {pipeline_mode = #tpu.pipeline_mode<synchronous>, transform_indices = @transform_8, window_bounds = array<i64: 1, 128>}, {pipeline_mode = #tpu.pipeline_mode<synchronous>, transform_indices = @transform_9, window_bounds = array<i64: 128, 128>}, {pipeline_mode = #tpu.pipeline_mode<synchronous>, transform_indices = @transform_10, window_bounds = array<i64: 1, 128>}, {pipeline_mode = #tpu.pipeline_mode<synchronous>, transform_indices = @transform_11, window_bounds = array<i64: 128, 4>}, {pipeline_mode = #tpu.pipeline_mode<synchronous>, transform_indices = @transform_12, window_bounds = array<i64: 1, 4>}, {transform_indices = @transform_13, window_bounds = array<i64: 64, 4>}]} {
    %c0 = arith.constant 0 : index
    %c0_0 = arith.constant 0 : index
    %0 = vector.load %arg1[%c0, %c0_0] : memref<8x16xbf16, #tpu.memory_space<vmem>>, vector<8x16xbf16>
    %c0_1 = arith.constant 0 : index
    %c0_2 = arith.constant 0 : index
    %1 = vector.load %arg4[%c0_1, %c0_2] : memref<16x128xbf16, #tpu.memory_space<vmem>>, vector<16x128xbf16>
    %cst = arith.constant dense<0.000000e+00> : vector<8x128xf32>
    %2 = tpu.matmul %0, %1, %cst {dimension_numbers = #tpu.dot_dimension_numbers<[1], [0], [0], [1], [0, 0, 1, 1], [], []>} : vector<8x16xbf16>, vector<16x128xbf16>, vector<8x128xf32> -> vector<8x128xf32>
    %c0_3 = arith.constant 0 : index
    %c0_4 = arith.constant 0 : index
    %3 = vector.load %arg5[%c0_3, %c0_4] : memref<1x128xf32, #tpu.memory_space<vmem>>, vector<1x128xf32>
    %4 = vector.broadcast %3 : vector<1x128xf32> to vector<8x128xf32>
    %5 = arith.addf %2, %4 : vector<8x128xf32>
    %cst_5 = arith.constant 0.000000e+00 : f32
    %6 = vector.broadcast %cst_5 : f32 to vector<8x128xf32>
    %7 = arith.maximumf %5, %6 : vector<8x128xf32>
    %8 = arith.truncf %7 : vector<8x128xf32> to vector<8x128xbf16>
    %c0_6 = arith.constant 0 : index
    %c0_7 = arith.constant 0 : index
    %9 = vector.load %arg6[%c0_6, %c0_7] : memref<128x128xbf16, #tpu.memory_space<vmem>>, vector<128x128xbf16>
    %cst_8 = arith.constant dense<0.000000e+00> : vector<8x128xf32>
    %10 = tpu.matmul %8, %9, %cst_8 {dimension_numbers = #tpu.dot_dimension_numbers<[1], [0], [0], [1], [0, 0, 1, 1], [], []>} : vector<8x128xbf16>, vector<128x128xbf16>, vector<8x128xf32> -> vector<8x128xf32>
    %c0_9 = arith.constant 0 : index
    %c0_10 = arith.constant 0 : index
    %11 = vector.load %arg7[%c0_9, %c0_10] : memref<1x128xf32, #tpu.memory_space<vmem>>, vector<1x128xf32>
    %12 = vector.broadcast %11 : vector<1x128xf32> to vector<8x128xf32>
    %13 = arith.addf %10, %12 : vector<8x128xf32>
    %cst_11 = arith.constant 0.000000e+00 : f32
    %14 = vector.broadcast %cst_11 : f32 to vector<8x128xf32>
    %15 = arith.maximumf %13, %14 : vector<8x128xf32>
    %16 = vector.shape_cast %15 : vector<8x128xf32> to vector<8x1x128xf32>
    %17 = vector.shape_cast %16 : vector<8x1x128xf32> to vector<8x1x128xf32>
    %18 = vector.broadcast %17 : vector<8x1x128xf32> to vector<8x8x128xf32>
    %19 = vector.shape_cast %18 : vector<8x8x128xf32> to vector<64x128xf32>
    %c0_12 = arith.constant 0 : index
    %c0_13 = arith.constant 0 : index
    %20 = vector.load %arg2[%c0_12, %c0_13] : memref<64x1xf32, #tpu.memory_space<vmem>>, vector<64x1xf32>
    %c0_14 = arith.constant 0 : index
    %c0_15 = arith.constant 0 : index
    %21 = vector.load %arg3[%c0_14, %c0_15] : memref<1x64xf32, #tpu.memory_space<vmem>>, vector<1x64xf32>
    %22 = vector.broadcast %20 : vector<64x1xf32> to vector<64x64xf32>
    %23 = vector.broadcast %21 : vector<1x64xf32> to vector<64x64xf32>
    %24 = arith.mulf %22, %23 : vector<64x64xf32>
    %25 = math.cos %24 : vector<64x64xf32>
    %26 = arith.truncf %25 : vector<64x64xf32> to vector<64x64xbf16>
    %c0_16 = arith.constant 0 : index
    %c0_17 = arith.constant 0 : index
    %27 = vector.load %arg8[%c0_16, %c0_17] : memref<64x128xbf16, #tpu.memory_space<vmem>>, vector<64x128xbf16>
    %cst_18 = arith.constant dense<0.000000e+00> : vector<64x128xf32>
    %28 = tpu.matmul %26, %27, %cst_18 {dimension_numbers = #tpu.dot_dimension_numbers<[1], [0], [0], [1], [0, 0, 1, 1], [], []>} : vector<64x64xbf16>, vector<64x128xbf16>, vector<64x128xf32> -> vector<64x128xf32>
    %c0_19 = arith.constant 0 : index
    %c0_20 = arith.constant 0 : index
    %29 = vector.load %arg9[%c0_19, %c0_20] : memref<1x128xf32, #tpu.memory_space<vmem>>, vector<1x128xf32>
    %30 = vector.broadcast %29 : vector<1x128xf32> to vector<64x128xf32>
    %31 = arith.addf %28, %30 : vector<64x128xf32>
    %32 = arith.mulf %19, %31 : vector<64x128xf32>
    %33 = arith.truncf %32 : vector<64x128xf32> to vector<64x128xbf16>
    %c0_21 = arith.constant 0 : index
    %c0_22 = arith.constant 0 : index
    %34 = vector.load %arg10[%c0_21, %c0_22] : memref<128x128xbf16, #tpu.memory_space<vmem>>, vector<128x128xbf16>
    %cst_23 = arith.constant dense<0.000000e+00> : vector<64x128xf32>
    %35 = tpu.matmul %33, %34, %cst_23 {dimension_numbers = #tpu.dot_dimension_numbers<[1], [0], [0], [1], [0, 0, 1, 1], [], []>} : vector<64x128xbf16>, vector<128x128xbf16>, vector<64x128xf32> -> vector<64x128xf32>
    %c0_24 = arith.constant 0 : index
    %c0_25 = arith.constant 0 : index
    %36 = vector.load %arg11[%c0_24, %c0_25] : memref<1x128xf32, #tpu.memory_space<vmem>>, vector<1x128xf32>
    %37 = vector.broadcast %36 : vector<1x128xf32> to vector<64x128xf32>
    %38 = arith.addf %35, %37 : vector<64x128xf32>
    %cst_26 = arith.constant 0.000000e+00 : f32
    %39 = vector.broadcast %cst_26 : f32 to vector<64x128xf32>
    %40 = arith.maximumf %38, %39 : vector<64x128xf32>
    %41 = arith.truncf %40 : vector<64x128xf32> to vector<64x128xbf16>
    %c0_27 = arith.constant 0 : index
    %c0_28 = arith.constant 0 : index
    %42 = vector.load %arg12[%c0_27, %c0_28] : memref<128x4xbf16, #tpu.memory_space<vmem>>, vector<128x4xbf16>
    %cst_29 = arith.constant dense<0.000000e+00> : vector<64x4xf32>
    %43 = tpu.matmul %41, %42, %cst_29 {dimension_numbers = #tpu.dot_dimension_numbers<[1], [0], [0], [1], [0, 0, 1, 1], [], []>} : vector<64x128xbf16>, vector<128x4xbf16>, vector<64x4xf32> -> vector<64x4xf32>
    %c0_30 = arith.constant 0 : index
    %c0_31 = arith.constant 0 : index
    %44 = vector.load %arg13[%c0_30, %c0_31] : memref<1x4xf32, #tpu.memory_space<vmem>>, vector<1x4xf32>
    %45 = vector.broadcast %44 : vector<1x4xf32> to vector<64x4xf32>
    %46 = arith.addf %43, %45 : vector<64x4xf32>
    %c0_32 = arith.constant 0 : index
    %c0_33 = arith.constant 0 : index
    %47 = vector.load %arg14[%c0_32, %c0_33] : memref<64x4xf32, #tpu.memory_space<vmem>>, vector<64x4xf32>
    tpu.vector_store %arg14[%c0_32, %c0_33], %46 {strides = array<i32>} : memref<64x4xf32, #tpu.memory_space<vmem>>, vector<64x4xf32>,
    return
  }
  func.func @transform_0(%arg0: i32) -> (i32, i32) {
    %c0_i32 = arith.constant 0 : i32
    %c0_i32_0 = arith.constant 0 : i32
    return %arg0, %c0_i32 : i32, i32
  }
  func.func @transform_1(%arg0: i32) -> (i32, i32) {
    %c0_i32 = arith.constant 0 : i32
    %c0_i32_0 = arith.constant 0 : i32
    return %arg0, %c0_i32 : i32, i32
  }
  func.func @transform_2(%arg0: i32) -> (i32, i32) {
    %c0_i32 = arith.constant 0 : i32
    %c0_i32_0 = arith.constant 0 : i32
    %c0_i32_1 = arith.constant 0 : i32
    return %c0_i32, %c0_i32_0 : i32, i32
  }
  func.func @transform_3(%arg0: i32) -> (i32, i32) {
    %c0_i32 = arith.constant 0 : i32
    %c0_i32_0 = arith.constant 0 : i32
    %c0_i32_1 = arith.constant 0 : i32
    return %c0_i32, %c0_i32_0 : i32, i32
  }
  func.func @transform_4(%arg0: i32) -> (i32, i32) {
    %c0_i32 = arith.constant 0 : i32
    %c0_i32_0 = arith.constant 0 : i32
    %c0_i32_1 = arith.constant 0 : i32
    return %c0_i32, %c0_i32_0 : i32, i32
  }
  func.func @transform_5(%arg0: i32) -> (i32, i32) {
    %c0_i32 = arith.constant 0 : i32
    %c0_i32_0 = arith.constant 0 : i32
    %c0_i32_1 = arith.constant 0 : i32
    return %c0_i32, %c0_i32_0 : i32, i32
  }
  func.func @transform_6(%arg0: i32) -> (i32, i32) {
    %c0_i32 = arith.constant 0 : i32
    %c0_i32_0 = arith.constant 0 : i32
    %c0_i32_1 = arith.constant 0 : i32
    return %c0_i32, %c0_i32_0 : i32, i32
  }
  func.func @transform_7(%arg0: i32) -> (i32, i32) {
    %c0_i32 = arith.constant 0 : i32
    %c0_i32_0 = arith.constant 0 : i32
    %c0_i32_1 = arith.constant 0 : i32
    return %c0_i32, %c0_i32_0 : i32, i32
  }
  func.func @transform_8(%arg0: i32) -> (i32, i32) {
    %c0_i32 = arith.constant 0 : i32
    %c0_i32_0 = arith.constant 0 : i32
    %c0_i32_1 = arith.constant 0 : i32
    return %c0_i32, %c0_i32_0 : i32, i32
  }
  func.func @transform_9(%arg0: i32) -> (i32, i32) {
    %c0_i32 = arith.constant 0 : i32
    %c0_i32_0 = arith.constant 0 : i32
    %c0_i32_1 = arith.constant 0 : i32
    return %c0_i32, %c0_i32_0 : i32, i32
  }
  func.func @transform_10(%arg0: i32) -> (i32, i32) {
    %c0_i32 = arith.constant 0 : i32
    %c0_i32_0 = arith.constant 0 : i32
    %c0_i32_1 = arith.constant 0 : i32
    return %c0_i32, %c0_i32_0 : i32, i32
  }
  func.func @transform_11(%arg0: i32) -> (i32, i32) {
    %c0_i32 = arith.constant 0 : i32
    %c0_i32_0 = arith.constant 0 : i32
    %c0_i32_1 = arith.constant 0 : i32
    return %c0_i32, %c0_i32_0 : i32, i32
  }
  func.func @transform_12(%arg0: i32) -> (i32, i32) {
    %c0_i32 = arith.constant 0 : i32
    %c0_i32_0 = arith.constant 0 : i32
    %c0_i32_1 = arith.constant 0 : i32
    return %c0_i32, %c0_i32_0 : i32, i32
  }
  func.func @transform_13(%arg0: i32) -> (i32, i32) {
    %c0_i32 = arith.constant 0 : i32
    %c0_i32_0 = arith.constant 0 : i32
    return %arg0, %c0_i32 : i32, i32
  }
}

</mosaic_0001>

<llo_original>
// kernel: tpu_custom_call.1
$region0: #{tpu_custom_call.1}
  #allocation0 [shape = 'u32[]', space=smem, size = 0x4, offset = 0x4, fixed_abs, tag = 'smem constant byte address 0x4 - core index']
  #allocation1 [shape = 'u32[72,128]{1,0:T(1,128)}', space=vmem, size = 0x9000, scoped, tag = 'internal scratch']
  %s0 = inlined_call_operand.hbm [shape: bf16[8,16], index: 0, kind: input, shape index: {}]
  %s1 = inlined_call_operand.vmem [shape: f32[64,1], index: 1, kind: input, shape index: {}]
  %s2 = inlined_call_operand.vmem [shape: f32[1,64], index: 2, kind: input, shape index: {}]
  %s3 = inlined_call_operand.hbm [shape: bf16[16,128], index: 3, kind: input, shape index: {}]
  %s4 = inlined_call_operand.vmem [shape: f32[1,128], index: 4, kind: input, shape index: {}]
  %s5 = inlined_call_operand.vmem [shape: bf16[128,128], index: 5, kind: input, shape index: {}]
  %s6 = inlined_call_operand.vmem [shape: f32[1,128], index: 6, kind: input, shape index: {}]
  %s7 = inlined_call_operand.hbm [shape: bf16[64,128], index: 7, kind: input, shape index: {}]
  %s8 = inlined_call_operand.vmem [shape: f32[1,128], index: 8, kind: input, shape index: {}]
  %s9 = inlined_call_operand.vmem [shape: bf16[128,128], index: 9, kind: input, shape index: {}]
  %s10 = inlined_call_operand.vmem [shape: f32[1,128], index: 10, kind: input, shape index: {}]
  %s11 = inlined_call_operand.vmem [shape: bf16[128,4], index: 11, kind: input, shape index: {}]
  %s12 = inlined_call_operand.vmem [shape: f32[1,4], index: 12, kind: input, shape index: {}]
  %s13 = inlined_call_operand.vmem [shape: f32[64,4], index: 13, kind: output, shape index: {}]
  %s14 = sld [smem:[#allocation0]]
  $region74: #{tpu_custom_call.1} parent=0
    _
  %s16 = ssub.s32 1, %s14
  %s17 = scalar_select 0, %s16, %s14
  $region1: #{tpu_custom_call.1} parent=0
    #allocation2 [shape = 'u8[2048]{0}', space=vmem, size = 0x800, scoped, tag = 'input window, operand 0, single buffered']
    #allocation3 [shape = 's32[1]{0}', space=sflag, size = 0x4, scoped, tag = 'scoped memory for tpu_custom_call.1']
    #allocation4 [shape = 'u8[4096]{0}', space=vmem, size = 0x1000, scoped, tag = 'input window, operand 3, single buffered']
    #allocation5 [shape = 's32[1]{0}', space=sflag, size = 0x4, scoped, tag = 'scoped memory for tpu_custom_call.1']
    #allocation6 [shape = 'u8[16384]{0}', space=vmem, size = 0x4000, scoped, tag = 'input window, operand 7, single buffered']
    %18 = vsyncpa [#allocation3], 0
    %19 = vsyncpa [#allocation5], 0
    // Predicated region
    $region2: #{tpu_custom_call.1} parent=1 // pred_check
      _
    $region3: #{tpu_custom_call.1} parent=1 // pred_check_branch
      %21 = sbr.rel (0) target = $region5
    $region4: #{tpu_custom_call.1} parent=1 // pred_region
      %23 = vsyncadd [#allocation3], 0
      %s25 = sshll.u32 %s0, 4
      %s26 = int_to_ptr.hbm [resolvable:$true] %s25
      %s27 = sshll.u32 [#allocation2], 4
      %s28 = int_to_ptr.vmem [resolvable:$true] %s27
      %30 = dma.hbm_to_vmem [thread:$0]  %s26, 64, %s28, [#allocation3]
    $region5: #{tpu_custom_call.1} parent=1 // pred_fallthru
      _
    // Predicated region
    $region6: #{tpu_custom_call.1} parent=1 // pred_check
      _
    $region7: #{tpu_custom_call.1} parent=1 // pred_check_branch
      %32 = sbr.rel (0) target = $region9
    $region8: #{tpu_custom_call.1} parent=1 // pred_region
      _
    $region9: #{tpu_custom_call.1} parent=1 // pred_fallthru
      _
    // Predicated region
    $region10: #{tpu_custom_call.1} parent=1 // pred_check
      _
    $region11: #{tpu_custom_call.1} parent=1 // pred_check_branch
      %34 = sbr.rel (0) target = $region13
    $region12: #{tpu_custom_call.1} parent=1 // pred_region
      _
    $region13: #{tpu_custom_call.1} parent=1 // pred_fallthru
      _
    // Predicated region
    $region14: #{tpu_custom_call.1} parent=1 // pred_check
      _
    $region15: #{tpu_custom_call.1} parent=1 // pred_check_branch
      %36 = sbr.rel (0) target = $region17
    $region16: #{tpu_custom_call.1} parent=1 // pred_region
      %38 = vsyncadd [#allocation5], 0
      %s39 = sshll.u32 %s3, 4
      %s40 = int_to_ptr.hbm [resolvable:$true] %s39
      %s41 = sshll.u32 [#allocation4], 4
      %s42 = int_to_ptr.vmem [resolvable:$true] %s41
      %47 = dma.hbm_to_vmem [thread:$0]  %s40, 128, %s42, [#allocation5], 64, 64, 4
    $region17: #{tpu_custom_call.1} parent=1 // pred_fallthru
      _
    // Predicated region
    $region18: #{tpu_custom_call.1} parent=1 // pred_check
      _
    $region19: #{tpu_custom_call.1} parent=1 // pred_check_branch
      %49 = sbr.rel (0) target = $region21
    $region20: #{tpu_custom_call.1} parent=1 // pred_region
      _
    $region21: #{tpu_custom_call.1} parent=1 // pred_fallthru
      _
    // Predicated region
    $region22: #{tpu_custom_call.1} parent=1 // pred_check
      _
    $region23: #{tpu_custom_call.1} parent=1 // pred_check_branch
      %51 = sbr.rel (0) target = $region25
    $region24: #{tpu_custom_call.1} parent=1 // pred_region
      _
    $region25: #{tpu_custom_call.1} parent=1 // pred_fallthru
      _
    // Predicated region
    $region26: #{tpu_custom_call.1} parent=1 // pred_check
      _
    $region27: #{tpu_custom_call.1} parent=1 // pred_check_branch
      %53 = sbr.rel (0) target = $region29
    $region28: #{tpu_custom_call.1} parent=1 // pred_region
      _
    $region29: #{tpu_custom_call.1} parent=1 // pred_fallthru
      _
    // Predicated region
    $region30: #{tpu_custom_call.1} parent=1 // pred_check
      _
    $region31: #{tpu_custom_call.1} parent=1 // pred_check_branch
      %55 = sbr.rel (0) target = $region33
    $region32: #{tpu_custom_call.1} parent=1 // pred_region
      %57 = vsyncadd [#allocation5], 0
      %s58 = sshll.u32 %s7, 4
      %s59 = int_to_ptr.hbm [resolvable:$true] %s58
      %s60 = sshll.u32 [#allocation6], 4
      %s61 = int_to_ptr.vmem [resolvable:$true] %s60
      %66 = dma.hbm_to_vmem [thread:$0]  %s59, 512, %s61, [#allocation5], 64, 64, 4
    $region33: #{tpu_custom_call.1} parent=1 // pred_fallthru
      _
    // Predicated region
    $region34: #{tpu_custom_call.1} parent=1 // pred_check
      _
    $region35: #{tpu_custom_call.1} parent=1 // pred_check_branch
      %68 = sbr.rel (0) target = $region37
    $region36: #{tpu_custom_call.1} parent=1 // pred_region
      _
    $region37: #{tpu_custom_call.1} parent=1 // pred_fallthru
      _
    // Predicated region
    $region38: #{tpu_custom_call.1} parent=1 // pred_check
      _
    $region39: #{tpu_custom_call.1} parent=1 // pred_check_branch
      %70 = sbr.rel (0) target = $region41
    $region40: #{tpu_custom_call.1} parent=1 // pred_region
      _
    $region41: #{tpu_custom_call.1} parent=1 // pred_fallthru
      _
    // Predicated region
    $region42: #{tpu_custom_call.1} parent=1 // pred_check
      _
    $region43: #{tpu_custom_call.1} parent=1 // pred_check_branch
      %72 = sbr.rel (0) target = $region45
    $region44: #{tpu_custom_call.1} parent=1 // pred_region
      _
    $region45: #{tpu_custom_call.1} parent=1 // pred_fallthru
      _
    // Predicated region
    $region46: #{tpu_custom_call.1} parent=1 // pred_check
      _
    $region47: #{tpu_custom_call.1} parent=1 // pred_check_branch
      %74 = sbr.rel (0) target = $region49
    $region48: #{tpu_custom_call.1} parent=1 // pred_region
      _
    $region49: #{tpu_custom_call.1} parent=1 // pred_fallthru
      _
    // Predicated region
    $region50: #{tpu_custom_call.1} parent=1 // pred_check
      _
    $region51: #{tpu_custom_call.1} parent=1 // pred_check_branch
      %76 = sbr.rel (0) target = $region53
    $region52: #{tpu_custom_call.1} parent=1 // pred_region
      _
    $region53: #{tpu_custom_call.1} parent=1 // pred_fallthru
      _
    // Predicated region
    $region54: #{tpu_custom_call.1} parent=1 // pred_check
      _
    $region55: #{tpu_custom_call.1} parent=1 // pred_check_branch
      %78 = sbr.rel (0) target = $region57
    $region56: #{tpu_custom_call.1} parent=1 // pred_region
      %80 = dma.done [#allocation3], 64
    $region57: #{tpu_custom_call.1} parent=1 // pred_fallthru
      _
    // Predicated region
    $region58: #{tpu_custom_call.1} parent=1 // pred_check
      _
    $region59: #{tpu_custom_call.1} parent=1 // pred_check_branch
      %82 = sbr.rel (0) target = $region61
    $region60: #{tpu_custom_call.1} parent=1 // pred_region
      %84 = dma.done [#allocation5], 128
    $region61: #{tpu_custom_call.1} parent=1 // pred_fallthru
      _
    // Predicated region
    $region62: #{tpu_custom_call.1} parent=1 // pred_check
      _
    $region63: #{tpu_custom_call.1} parent=1 // pred_check_branch
      %86 = sbr.rel (0) target = $region65
    $region64: #{tpu_custom_call.1} parent=1 // pred_region
      %88 = dma.done [#allocation5], 512
    $region65: #{tpu_custom_call.1} parent=1 // pred_fallthru
      _
    %v90 = vld [vmem:[#allocation2] sm:$0xf]
    %v91 = vld [vmem:[#allocation4] sm:$0xf]
    %v92 = vld [vmem:[#allocation4 + $0x4] sm:$0xf]
    %v93 = vld [vmem:[%s4] sm:$0x1]
    %v95 = vperm.slane %v93, 0
    %v99 = vunpack.c.l.b16 %v91
    %v100 = vunpack.c.l.b16 %v92
    %v101 = vpack.c.b16 %v100, %v99
    %vm103 = vcmask 130048
    %v105 = vsel %vm103, %v90, 0
    %107 = vmatpush.bf16.msra.mxu0 0
    %108 = vmatpush.bf16.msra.mxu0 0
    %109 = vmatpush.bf16.msra.mxu0 0
    %110 = vmatpush.bf16.msra.mxu0 0
    %111 = vmatpush.bf16.msra.mxu0 0
    %112 = vmatpush.bf16.msra.mxu0 0
    %113 = vmatpush.bf16.msra.mxu0 0
    %114 = vmatpush.bf16.msra.mxu0 %v101
    %115 = vmatmul.bf16.gmra.mxu0 %v105
    %v116 = vpop.f32.mrf.mxu0
    %v117 = vadd.f32 %v95, %v116
    %v118 = vpop.f32.mrf.mxu0
    %119 = vdwg.mxu0
    %v120 = vmax.f32 %v117, 0.0
    %v121 = vpack.c.bf16 %v120, %v120
    %v122 = vld [vmem:[%s5] sm:$0xf]
    %v123 = vld [vmem:[%s5 + $0x4] sm:$0xf]
    %v124 = vld [vmem:[%s5 + $0x8] sm:$0xf]
    %v125 = vld [vmem:[%s5 + $0xc] sm:$0xf]
    %v126 = vld [vmem:[%s5 + $0x10] sm:$0xf]
    %v127 = vld [vmem:[%s5 + $0x14] sm:$0xf]
    %v128 = vld [vmem:[%s5 + $0x18] sm:$0xf]
    %v129 = vld [vmem:[%s5 + $0x1c] sm:$0xf]
    %v130 = vld [vmem:[%s5 + $0x20] sm:$0xf]
    %v131 = vld [vmem:[%s5 + $0x24] sm:$0xf]
    %v132 = vld [vmem:[%s5 + $0x28] sm:$0xf]
    %v133 = vld [vmem:[%s5 + $0x2c] sm:$0xf]
    %v134 = vld [vmem:[%s5 + $0x30] sm:$0xf]
    %v135 = vld [vmem:[%s5 + $0x34] sm:$0xf]
    %v136 = vld [vmem:[%s5 + $0x38] sm:$0xf]
    %v137 = vld [vmem:[%s5 + $0x3c] sm:$0xf]
    %v138 = vld [vmem:[%s6] sm:$0x1]
    %v140 = vperm.slane %v138, 0
    %v158 = vunpack.c.l.b16 %v122
    %v159 = vunpack.c.l.b16 %v123
    %v160 = vunpack.c.l.b16 %v124
    %v161 = vunpack.c.l.b16 %v125
    %v162 = vunpack.c.l.b16 %v126
    %v163 = vunpack.c.l.b16 %v127
    %v164 = vunpack.c.l.b16 %v128
    %v165 = vunpack.c.l.b16 %v129
    %v166 = vunpack.c.l.b16 %v130
    %v167 = vunpack.c.l.b16 %v131
    %v168 = vunpack.c.l.b16 %v132
    %v169 = vunpack.c.l.b16 %v133
    %v170 = vunpack.c.l.b16 %v134
    %v171 = vunpack.c.l.b16 %v135
    %v172 = vunpack.c.l.b16 %v136
    %v173 = vunpack.c.l.b16 %v137
    %v174 = vpack.c.b16 %v159, %v158
    %v175 = vpack.c.b16 %v161, %v160
    %v176 = vpack.c.b16 %v163, %v162
    %v177 = vpack.c.b16 %v165, %v164
    %v178 = vpack.c.b16 %v167, %v166
    %v179 = vpack.c.b16 %v169, %v168
    %v180 = vpack.c.b16 %v171, %v170
    %v181 = vpack.c.b16 %v173, %v172
    %190 = vmatpush.bf16.msra.mxu0 %v181
    %191 = vmatpush.bf16.msra.mxu0 %v180
    %192 = vmatpush.bf16.msra.mxu0 %v179
    %193 = vmatpush.bf16.msra.mxu0 %v178
    %194 = vmatpush.bf16.msra.mxu0 %v177
    %195 = vmatpush.bf16.msra.mxu0 %v176
    %196 = vmatpush.bf16.msra.mxu0 %v175
    %197 = vmatpush.bf16.msra.mxu0 %v174
    %198 = vmatmul.bf16.gmra.mxu0 %v121
    %v199 = vpop.f32.mrf.mxu0
    %v200 = vadd.f32 %v140, %v199
    %v201 = vpop.f32.mrf.mxu0
    %202 = vdwg.mxu0
    %v203 = vmax.f32 %v200, 0.0
    %v205 = vrot.slane %v203, 1
    %v206 = vrot.slane %v203, 2
    %v207 = vrot.slane %v203, 3
    %v208 = vrot.slane %v203, 4
    %v209 = vrot.slane %v203, 5
    %v210 = vrot.slane %v203, 6
    %v211 = vrot.slane %v203, 7
    %v212 = vperm.slane %v203, 0
    %v213 = vperm.slane %v205, 0
    %v214 = vperm.slane %v206, 0
    %v215 = vperm.slane %v207, 0
    %v216 = vperm.slane %v208, 0
    %v217 = vperm.slane %v209, 0
    %v218 = vperm.slane %v210, 0
    %v219 = vperm.slane %v211, 0
    %v228 = vld [vmem:[%s1] sm:$0xff]
    %v229 = vld [vmem:[%s1 + $0x8] sm:$0xff]
    %v230 = vld [vmem:[%s1 + $0x10] sm:$0xff]
    %v231 = vld [vmem:[%s1 + $0x18] sm:$0xff]
    %v232 = vld [vmem:[%s1 + $0x20] sm:$0xff]
    %v233 = vld [vmem:[%s1 + $0x28] sm:$0xff]
    %v234 = vld [vmem:[%s1 + $0x30] sm:$0xff]
    %v235 = vld [vmem:[%s1 + $0x38] sm:$0xff]
    %v236 = vld [vmem:[%s2] sm:$0x1]
    %238 = vset.pattern.permute.xlu0 0
    %239 = vperm.xlu0 %238, %v228
    %v240 = vpop.permute.xlu0 %239
    %243 = vset.pattern.permute.xlu0 0
    %244 = vperm.xlu0 %243, %v229
    %v245 = vpop.permute.xlu0 %244
    %248 = vset.pattern.permute.xlu0 0
    %249 = vperm.xlu0 %248, %v230
    %v250 = vpop.permute.xlu0 %249
    %253 = vset.pattern.permute.xlu0 0
    %254 = vperm.xlu0 %253, %v231
    %v255 = vpop.permute.xlu0 %254
    %258 = vset.pattern.permute.xlu0 0
    %259 = vperm.xlu0 %258, %v232
    %v260 = vpop.permute.xlu0 %259
    %263 = vset.pattern.permute.xlu0 0
    %264 = vperm.xlu0 %263, %v233
    %v265 = vpop.permute.xlu0 %264
    %268 = vset.pattern.permute.xlu0 0
    %269 = vperm.xlu0 %268, %v234
    %v270 = vpop.permute.xlu0 %269
    %273 = vset.pattern.permute.xlu0 0
    %274 = vperm.xlu0 %273, %v235
    %v275 = vpop.permute.xlu0 %274
    %v278 = vperm.slane %v236, 0
    %v280 = vmul.f32 %v240, %v278
    %v281 = vmul.f32 %v245, %v278
    %v282 = vmul.f32 %v250, %v278
    %v283 = vmul.f32 %v255, %v278
    %v284 = vmul.f32 %v260, %v278
    %v285 = vmul.f32 %v265, %v278
    %v286 = vmul.f32 %v270, %v278
    %v287 = vmul.f32 %v275, %v278
    %v288 = vand.u32 2147483647, %v280
    %vm289 = vcmp.le.f32.partialorder %v288, 0.7853982
    %vm290 = vcmp.lt.s32.totalorder %v280, 0
    %v291 = vand.u32 %v280, 2139095040
    %v292 = vshrl.u32 %v291, 23
    %v293 = vsub.s32 %v292, 127
    %v294 = vand.u32 2147483647, %v280
    %v295 = vand.u32 %v294, 8388607
    %v296 = vor.u32 %v295, 8388608
    %v297 = vsub.s32 0, %v296
    %v298 = vadd.s32 %v293, 1
    %vm299 = vcmp.gt.s32.totalorder %v298, 0
    %v300 = vsel %vm299, %v298, 0
    %v301 = vshrl.u32 %v300, 5
    %v302 = vand.u32 %v300, 31
    %v303 = vsub.s32 32, %v302
    %v304 = vshrl.u32 683565275, %v303
    %v305 = vshll.u32 683565275, %v302
    %v306 = vshrl.u32 2475754826, %v303
    %v307 = vor.u32 %v305, %v306
    %v308 = vshll.u32 2475754826, %v302
    %v309 = vshrl.u32 2131351028, %v303
    %v310 = vor.u32 %v308, %v309
    %v311 = vshll.u32 2131351028, %v302
    %v312 = vshrl.u32 2102212464, %v303
    %v313 = vor.u32 %v311, %v312
    %v314 = vshll.u32 2102212464, %v302
    %v315 = vshrl.u32 920167782, %v303
    %v316 = vor.u32 %v314, %v315
    %v317 = vshll.u32 920167782, %v302
    %v318 = vshrl.u32 1326507024, %v303
    %v319 = vor.u32 %v317, %v318
    %vm320 = vcmp.lt.s32.totalorder %v301, 1
    %vm321 = vcmp.lt.s32.totalorder %v301, 2
    %vm322 = vcmp.lt.s32.totalorder %v301, 3
    %vm323 = vcmp.lt.s32.totalorder %v301, 4
    %v324 = vsel %vm320, %v304, %v307
    %v325 = vsel %vm323, %v313, 2102212464
    %v326 = vsel %vm322, %v310, %v325
    %v327 = vsel %vm321, %v324, %v326
    %v328 = vsel %vm320, %v307, %v310
    %v329 = vsel %vm323, %v316, 920167782
    %v330 = vsel %vm322, %v313, %v329
    %v331 = vsel %vm321, %v328, %v330
    %v332 = vsel %vm320, %v310, %v313
    %v333 = vsel %vm323, %v319, 1326507024
    %v334 = vsel %vm322, %v316, %v333
    %v335 = vsel %vm321, %v332, %v334
    %v336 = vshll.u32 %v296, 8
    %v337 = vand.u32 %v336, 65535
    %v338 = vshrl.u32 %v336, 16
    %v339 = vand.u32 %v335, 65535
    %v340 = vshrl.u32 %v335, 16
    %v341 = vmul.u32 %v337, %v339
    %v342 = vmul.u32 %v337, %v340
    %v343 = vmul.u32 %v338, %v339
    %v344 = vmul.u32 %v338, %v340
    %v345 = vshll.u32 %v342, 16
    %v346 = vshrl.u32 %v342, 16
    %v347 = vshll.u32 %v343, 16
    %v348 = vshrl.u32 %v343, 16
    %vm349 = vc.u32 %v341, %v345
    %v350 = vsel %vm349, 1, 0
    %v351 = vadd.s32 %v341, %v345
    %v352 = vadd.s32 %v344, %v350
    %vm353 = vc.u32 %v351, %v347
    %v354 = vsel %vm353, 1, 0
    %v355 = vadd.s32 %v351, %v347
    %v356 = vadd.s32 %v352, %v354
    %v357 = vadd.s32 %v356, %v346
    %v358 = vadd.s32 %v357, %v348
    %v359 = vand.u32 %v336, 65535
    %v360 = vshrl.u32 %v336, 16
    %v361 = vand.u32 %v331, 65535
    %v362 = vshrl.u32 %v331, 16
    %v363 = vmul.u32 %v359, %v361
    %v364 = vmul.u32 %v359, %v362
    %v365 = vmul.u32 %v360, %v361
    %v366 = vmul.u32 %v360, %v362
    %v367 = vshll.u32 %v364, 16
    %v368 = vshrl.u32 %v364, 16
    %v369 = vshll.u32 %v365, 16
    %v370 = vshrl.u32 %v365, 16
    %vm371 = vc.u32 %v363, %v367
    %v372 = vsel %vm371, 1, 0
    %v373 = vadd.s32 %v363, %v367
    %v374 = vadd.s32 %v366, %v372
    %vm375 = vc.u32 %v373, %v369
    %v376 = vsel %vm375, 1, 0
    %v377 = vadd.s32 %v373, %v369
    %v378 = vadd.s32 %v374, %v376
    %v379 = vadd.s32 %v378, %v368
    %v380 = vadd.s32 %v379, %v370
    %v381 = vmul.u32 %v336, %v327
    %v382 = vadd.s32 %v358, %v377
    %vm383 = vc.u32 %v358, %v377
    %v384 = vadd.s32 %v380, 1
    %v385 = vsel %vm383, %v384, %v380
    %v386 = vadd.s32 %v381, %v385
    %v387 = vadd.s32 %v386, 536870912
    %v388 = vshrl.u32 %v387, 30
    %v389 = vshll.u32 %v388, 30
    %v390 = vsub.s32 %v386, %v389
    %vm391 = vcmp.lt.s32.totalorder %v390, 0
    %v392 = vsub.s32 0, %v390
    %v393 = vsel %vm391, %v392, %v390
    %v394 = vclz %v393
    %v395 = vsub.s32 %v394, 2
    %vm396 = vcmp.gt.s32.totalorder 0, %v395
    %v397 = vsel %vm396, 0, %v395
    %v398 = vsub.s32 32, %v397
    %v399 = vshll.u32 %v390, %v397
    %v400 = vshrl.u32 %v382, %v398
    %v401 = vor.u32 %v399, %v400
    %v402 = vsub.s32 4294967266, %v397
    %v403 = vadd.s32 %v402, 127
    %v404 = vshll.u32 %v403, 23
    %v405 = vor.u32 4788187, %v404
    %v406 = vand.u32 2147483647, %v405
    %v408 = vcvt.s32.f32 %v401
    %v409 = vmul.f32 %v408, %v406
    %v410 = vxor.u32 %v409, 2147483648
    %v411 = vsel %vm290, %v410, %v409
    %v412 = vsub.s32 4, %v388
    %v413 = vsel %vm290, %v412, %v388
    %v414 = vsel %vm289, %v280, %v411
    %v415 = vsel %vm289, 0, %v413
    %v416 = vmul.f32 %v414, %v414
    %v417 = vmul.f32 %v416, -0.001358992
    %v418 = vadd.f32 %v417, 0.041655596
    %v419 = vmul.f32 %v416, %v418
    %v420 = vadd.f32 %v419, -0.4999988
    %v421 = vmul.f32 %v416, %v420
    %v422 = vadd.f32 1.0, %v421
    %v423 = vmul.f32 %v414, %v414
    %v424 = vmul.f32 %v423, -0.00019511016
    %v425 = vadd.f32 %v424, 0.008332121
    %v426 = vmul.f32 %v423, %v425
    %v427 = vadd.f32 %v426, -0.16666654
    %v428 = vmul.f32 %v423, %v427
    %v429 = vadd.f32 %v428, 1.0
    %v430 = vmul.f32 %v429, %v414
    %vm431 = vweird.f32 %v280
    %v432 = vand.u32 %v415, 3
    %vm433 = vcmp.lt.s32.totalorder %v432, 2
    %vm434 = vcmp.eq.s32.totalorder %v432, 0
    %v435 = vxor.u32 %v430, 2147483648
    %v436 = vsel %vm434, %v422, %v435
    %vm437 = vcmp.eq.s32.totalorder %v432, 2
    %v438 = vxor.u32 %v422, 2147483648
    %v439 = vsel %vm437, %v438, %v430
    %v440 = vsel %vm433, %v436, %v439
    %v441 = vsel %vm431, nan, %v440
    %v442 = vand.u32 2147483647, %v281
    %vm443 = vcmp.le.f32.partialorder %v442, 0.7853982
    %vm444 = vcmp.lt.s32.totalorder %v281, 0
    %v445 = vand.u32 %v281, 2139095040
    %v446 = vshrl.u32 %v445, 23
    %v447 = vsub.s32 %v446, 127
    %v448 = vand.u32 2147483647, %v281
    %v449 = vand.u32 %v448, 8388607
    %v450 = vor.u32 %v449, 8388608
    %v451 = vsub.s32 0, %v450
    %v452 = vadd.s32 %v447, 1
    %vm453 = vcmp.gt.s32.totalorder %v452, 0
    %v454 = vsel %vm453, %v452, 0
    %v455 = vshrl.u32 %v454, 5
    %v456 = vand.u32 %v454, 31
    %v457 = vsub.s32 32, %v456
    %v458 = vshrl.u32 683565275, %v457
    %v459 = vshll.u32 683565275, %v456
    %v460 = vshrl.u32 2475754826, %v457
    %v461 = vor.u32 %v459, %v460
    %v462 = vshll.u32 2475754826, %v456
    %v463 = vshrl.u32 2131351028, %v457
    %v464 = vor.u32 %v462, %v463
    %v465 = vshll.u32 2131351028, %v456
    %v466 = vshrl.u32 2102212464, %v457
    %v467 = vor.u32 %v465, %v466
    %v468 = vshll.u32 2102212464, %v456
    %v469 = vshrl.u32 920167782, %v457
    %v470 = vor.u32 %v468, %v469
    %v471 = vshll.u32 920167782, %v456
    %v472 = vshrl.u32 1326507024, %v457
    %v473 = vor.u32 %v471, %v472
    %vm474 = vcmp.lt.s32.totalorder %v455, 1
    %vm475 = vcmp.lt.s32.totalorder %v455, 2
    %vm476 = vcmp.lt.s32.totalorder %v455, 3
    %vm477 = vcmp.lt.s32.totalorder %v455, 4
    %v478 = vsel %vm474, %v458, %v461
    %v479 = vsel %vm477, %v467, 2102212464
    %v480 = vsel %vm476, %v464, %v479
    %v481 = vsel %vm475, %v478, %v480
    %v482 = vsel %vm474, %v461, %v464
    %v483 = vsel %vm477, %v470, 920167782
    %v484 = vsel %vm476, %v467, %v483
    %v485 = vsel %vm475, %v482, %v484
    %v486 = vsel %vm474, %v464, %v467
    %v487 = vsel %vm477, %v473, 1326507024
    %v488 = vsel %vm476, %v470, %v487
    %v489 = vsel %vm475, %v486, %v488
    %v490 = vshll.u32 %v450, 8
    %v491 = vand.u32 %v490, 65535
    %v492 = vshrl.u32 %v490, 16
    %v493 = vand.u32 %v489, 65535
    %v494 = vshrl.u32 %v489, 16
    %v495 = vmul.u32 %v491, %v493
    %v496 = vmul.u32 %v491, %v494
    %v497 = vmul.u32 %v492, %v493
    %v498 = vmul.u32 %v492, %v494
    %v499 = vshll.u32 %v496, 16
    %v500 = vshrl.u32 %v496, 16
    %v501 = vshll.u32 %v497, 16
    %v502 = vshrl.u32 %v497, 16
    %vm503 = vc.u32 %v495, %v499
    %v504 = vsel %vm503, 1, 0
    %v505 = vadd.s32 %v495, %v499
    %v506 = vadd.s32 %v498, %v504
    %vm507 = vc.u32 %v505, %v501
    %v508 = vsel %vm507, 1, 0
    %v509 = vadd.s32 %v505, %v501
    %v510 = vadd.s32 %v506, %v508
    %v511 = vadd.s32 %v510, %v500
    %v512 = vadd.s32 %v511, %v502
    %v513 = vand.u32 %v490, 65535
    %v514 = vshrl.u32 %v490, 16
    %v515 = vand.u32 %v485, 65535
    %v516 = vshrl.u32 %v485, 16
    %v517 = vmul.u32 %v513, %v515
    %v518 = vmul.u32 %v513, %v516
    %v519 = vmul.u32 %v514, %v515
    %v520 = vmul.u32 %v514, %v516
    %v521 = vshll.u32 %v518, 16
    %v522 = vshrl.u32 %v518, 16
    %v523 = vshll.u32 %v519, 16
    %v524 = vshrl.u32 %v519, 16
    %vm525 = vc.u32 %v517, %v521
    %v526 = vsel %vm525, 1, 0
    %v527 = vadd.s32 %v517, %v521
    %v528 = vadd.s32 %v520, %v526
    %vm529 = vc.u32 %v527, %v523
    %v530 = vsel %vm529, 1, 0
    %v531 = vadd.s32 %v527, %v523
    %v532 = vadd.s32 %v528, %v530
    %v533 = vadd.s32 %v532, %v522
    %v534 = vadd.s32 %v533, %v524
    %v535 = vmul.u32 %v490, %v481
    %v536 = vadd.s32 %v512, %v531
    %vm537 = vc.u32 %v512, %v531
    %v538 = vadd.s32 %v534, 1
    %v539 = vsel %vm537, %v538, %v534
    %v540 = vadd.s32 %v535, %v539
    %v541 = vadd.s32 %v540, 536870912
    %v542 = vshrl.u32 %v541, 30
    %v543 = vshll.u32 %v542, 30
    %v544 = vsub.s32 %v540, %v543
    %vm545 = vcmp.lt.s32.totalorder %v544, 0
    %v546 = vsub.s32 0, %v544
    %v547 = vsel %vm545, %v546, %v544
    %v548 = vclz %v547
    %v549 = vsub.s32 %v548, 2
    %vm550 = vcmp.gt.s32.totalorder 0, %v549
    %v551 = vsel %vm550, 0, %v549
    %v552 = vsub.s32 32, %v551
    %v553 = vshll.u32 %v544, %v551
    %v554 = vshrl.u32 %v536, %v552
    %v555 = vor.u32 %v553, %v554
    %v556 = vsub.s32 4294967266, %v551
    %v557 = vadd.s32 %v556, 127
    %v558 = vshll.u32 %v557, 23
    %v559 = vor.u32 4788187, %v558
    %v560 = vand.u32 2147483647, %v559
    %v562 = vcvt.s32.f32 %v555
    %v563 = vmul.f32 %v562, %v560
    %v564 = vxor.u32 %v563, 2147483648
    %v565 = vsel %vm444, %v564, %v563
    %v566 = vsub.s32 4, %v542
    %v567 = vsel %vm444, %v566, %v542
    %v568 = vsel %vm443, %v281, %v565
    %v569 = vsel %vm443, 0, %v567
    %v570 = vmul.f32 %v568, %v568
    %v571 = vmul.f32 %v570, -0.001358992
    %v572 = vadd.f32 %v571, 0.041655596
    %v573 = vmul.f32 %v570, %v572
    %v574 = vadd.f32 %v573, -0.4999988
    %v575 = vmul.f32 %v570, %v574
    %v576 = vadd.f32 1.0, %v575
    %v577 = vmul.f32 %v568, %v568
    %v578 = vmul.f32 %v577, -0.00019511016
    %v579 = vadd.f32 %v578, 0.008332121
    %v580 = vmul.f32 %v577, %v579
    %v581 = vadd.f32 %v580, -0.16666654
    %v582 = vmul.f32 %v577, %v581
    %v583 = vadd.f32 %v582, 1.0
    %v584 = vmul.f32 %v583, %v568
    %vm585 = vweird.f32 %v281
    %v586 = vand.u32 %v569, 3
    %vm587 = vcmp.lt.s32.totalorder %v586, 2
    %vm588 = vcmp.eq.s32.totalorder %v586, 0
    %v589 = vxor.u32 %v584, 2147483648
    %v590 = vsel %vm588, %v576, %v589
    %vm591 = vcmp.eq.s32.totalorder %v586, 2
    %v592 = vxor.u32 %v576, 2147483648
    %v593 = vsel %vm591, %v592, %v584
    %v594 = vsel %vm587, %v590, %v593
    %v595 = vsel %vm585, nan, %v594
    %v596 = vand.u32 2147483647, %v282
    %vm597 = vcmp.le.f32.partialorder %v596, 0.7853982
    %vm598 = vcmp.lt.s32.totalorder %v282, 0
    %v599 = vand.u32 %v282, 2139095040
    %v600 = vshrl.u32 %v599, 23
    %v601 = vsub.s32 %v600, 127
    %v602 = vand.u32 2147483647, %v282
    %v603 = vand.u32 %v602, 8388607
    %v604 = vor.u32 %v603, 8388608
    %v605 = vsub.s32 0, %v604
    %v606 = vadd.s32 %v601, 1
    %vm607 = vcmp.gt.s32.totalorder %v606, 0
    %v608 = vsel %vm607, %v606, 0
    %v609 = vshrl.u32 %v608, 5
    %v610 = vand.u32 %v608, 31
    %v611 = vsub.s32 32, %v610
    %v612 = vshrl.u32 683565275, %v611
    %v613 = vshll.u32 683565275, %v610
    %v614 = vshrl.u32 2475754826, %v611
    %v615 = vor.u32 %v613, %v614
    %v616 = vshll.u32 2475754826, %v610
    %v617 = vshrl.u32 2131351028, %v611
    %v618 = vor.u32 %v616, %v617
    %v619 = vshll.u32 2131351028, %v610
    %v620 = vshrl.u32 2102212464, %v611
    %v621 = vor.u32 %v619, %v620
    %v622 = vshll.u32 2102212464, %v610
    %v623 = vshrl.u32 920167782, %v611
    %v624 = vor.u32 %v622, %v623
    %v625 = vshll.u32 920167782, %v610
    %v626 = vshrl.u32 1326507024, %v611
    %v627 = vor.u32 %v625, %v626
    %vm628 = vcmp.lt.s32.totalorder %v609, 1
    %vm629 = vcmp.lt.s32.totalorder %v609, 2
    %vm630 = vcmp.lt.s32.totalorder %v609, 3
    %vm631 = vcmp.lt.s32.totalorder %v609, 4
    %v632 = vsel %vm628, %v612, %v615
    %v633 = vsel %vm631, %v621, 2102212464
    %v634 = vsel %vm630, %v618, %v633
    %v635 = vsel %vm629, %v632, %v634
    %v636 = vsel %vm628, %v615, %v618
    %v637 = vsel %vm631, %v624, 920167782
    %v638 = vsel %vm630, %v621, %v637
    %v639 = vsel %vm629, %v636, %v638
    %v640 = vsel %vm628, %v618, %v621
    %v641 = vsel %vm631, %v627, 1326507024
    %v642 = vsel %vm630, %v624, %v641
    %v643 = vsel %vm629, %v640, %v642
    %v644 = vshll.u32 %v604, 8
    %v645 = vand.u32 %v644, 65535
    %v646 = vshrl.u32 %v644, 16
    %v647 = vand.u32 %v643, 65535
    %v648 = vshrl.u32 %v643, 16
    %v649 = vmul.u32 %v645, %v647
    %v650 = vmul.u32 %v645, %v648
    %v651 = vmul.u32 %v646, %v647
    %v652 = vmul.u32 %v646, %v648
    %v653 = vshll.u32 %v650, 16
    %v654 = vshrl.u32 %v650, 16
    %v655 = vshll.u32 %v651, 16
    %v656 = vshrl.u32 %v651, 16
    %vm657 = vc.u32 %v649, %v653
    %v658 = vsel %vm657, 1, 0
    %v659 = vadd.s32 %v649, %v653
    %v660 = vadd.s32 %v652, %v658
    %vm661 = vc.u32 %v659, %v655
    %v662 = vsel %vm661, 1, 0
    %v663 = vadd.s32 %v659, %v655
    %v664 = vadd.s32 %v660, %v662
    %v665 = vadd.s32 %v664, %v654
    %v666 = vadd.s32 %v665, %v656
    %v667 = vand.u32 %v644, 65535
    %v668 = vshrl.u32 %v644, 16
    %v669 = vand.u32 %v639, 65535
    %v670 = vshrl.u32 %v639, 16
    %v671 = vmul.u32 %v667, %v669
    %v672 = vmul.u32 %v667, %v670
    %v673 = vmul.u32 %v668, %v669
    %v674 = vmul.u32 %v668, %v670
    %v675 = vshll.u32 %v672, 16
    %v676 = vshrl.u32 %v672, 16
    %v677 = vshll.u32 %v673, 16
    %v678 = vshrl.u32 %v673, 16
    %vm679 = vc.u32 %v671, %v675
    %v680 = vsel %vm679, 1, 0
    %v681 = vadd.s32 %v671, %v675
    %v682 = vadd.s32 %v674, %v680
    %vm683 = vc.u32 %v681, %v677
    %v684 = vsel %vm683, 1, 0
    %v685 = vadd.s32 %v681, %v677
    %v686 = vadd.s32 %v682, %v684
    %v687 = vadd.s32 %v686, %v676
    %v688 = vadd.s32 %v687, %v678
    %v689 = vmul.u32 %v644, %v635
    %v690 = vadd.s32 %v666, %v685
    %vm691 = vc.u32 %v666, %v685
    %v692 = vadd.s32 %v688, 1
    %v693 = vsel %vm691, %v692, %v688
    %v694 = vadd.s32 %v689, %v693
    %v695 = vadd.s32 %v694, 536870912
    %v696 = vshrl.u32 %v695, 30
    %v697 = vshll.u32 %v696, 30
    %v698 = vsub.s32 %v694, %v697
    %vm699 = vcmp.lt.s32.totalorder %v698, 0
    %v700 = vsub.s32 0, %v698
    %v701 = vsel %vm699, %v700, %v698
    %v702 = vclz %v701
    %v703 = vsub.s32 %v702, 2
    %vm704 = vcmp.gt.s32.totalorder 0, %v703
    %v705 = vsel %vm704, 0, %v703
    %v706 = vsub.s32 32, %v705
    %v707 = vshll.u32 %v698, %v705
    %v708 = vshrl.u32 %v690, %v706
    %v709 = vor.u32 %v707, %v708
    %v710 = vsub.s32 4294967266, %v705
    %v711 = vadd.s32 %v710, 127
    %v712 = vshll.u32 %v711, 23
    %v713 = vor.u32 4788187, %v712
    %v714 = vand.u32 2147483647, %v713
    %v716 = vcvt.s32.f32 %v709
    %v717 = vmul.f32 %v716, %v714
    %v718 = vxor.u32 %v717, 2147483648
    %v719 = vsel %vm598, %v718, %v717
    %v720 = vsub.s32 4, %v696
    %v721 = vsel %vm598, %v720, %v696
    %v722 = vsel %vm597, %v282, %v719
    %v723 = vsel %vm597, 0, %v721
    %v724 = vmul.f32 %v722, %v722
    %v725 = vmul.f32 %v724, -0.001358992
    %v726 = vadd.f32 %v725, 0.041655596
    %v727 = vmul.f32 %v724, %v726
    %v728 = vadd.f32 %v727, -0.4999988
    %v729 = vmul.f32 %v724, %v728
    %v730 = vadd.f32 1.0, %v729
    %v731 = vmul.f32 %v722, %v722
    %v732 = vmul.f32 %v731, -0.00019511016
    %v733 = vadd.f32 %v732, 0.008332121
    %v734 = vmul.f32 %v731, %v733
    %v735 = vadd.f32 %v734, -0.16666654
    %v736 = vmul.f32 %v731, %v735
    %v737 = vadd.f32 %v736, 1.0
    %v738 = vmul.f32 %v737, %v722
    %vm739 = vweird.f32 %v282
    %v740 = vand.u32 %v723, 3
    %vm741 = vcmp.lt.s32.totalorder %v740, 2
    %vm742 = vcmp.eq.s32.totalorder %v740, 0
    %v743 = vxor.u32 %v738, 2147483648
    %v744 = vsel %vm742, %v730, %v743
    %vm745 = vcmp.eq.s32.totalorder %v740, 2
    %v746 = vxor.u32 %v730, 2147483648
    %v747 = vsel %vm745, %v746, %v738
    %v748 = vsel %vm741, %v744, %v747
    %v749 = vsel %vm739, nan, %v748
    %v750 = vand.u32 2147483647, %v283
    %vm751 = vcmp.le.f32.partialorder %v750, 0.7853982
    %vm752 = vcmp.lt.s32.totalorder %v283, 0
    %v753 = vand.u32 %v283, 2139095040
    %v754 = vshrl.u32 %v753, 23
    %v755 = vsub.s32 %v754, 127
    %v756 = vand.u32 2147483647, %v283
    %v757 = vand.u32 %v756, 8388607
    %v758 = vor.u32 %v757, 8388608
    %v759 = vsub.s32 0, %v758
    %v760 = vadd.s32 %v755, 1
    %vm761 = vcmp.gt.s32.totalorder %v760, 0
    %v762 = vsel %vm761, %v760, 0
    %v763 = vshrl.u32 %v762, 5
    %v764 = vand.u32 %v762, 31
    %v765 = vsub.s32 32, %v764
    %v766 = vshrl.u32 683565275, %v765
    %v767 = vshll.u32 683565275, %v764
    %v768 = vshrl.u32 2475754826, %v765
    %v769 = vor.u32 %v767, %v768
    %v770 = vshll.u32 2475754826, %v764
    %v771 = vshrl.u32 2131351028, %v765
    %v772 = vor.u32 %v770, %v771
    %v773 = vshll.u32 2131351028, %v764
    %v774 = vshrl.u32 2102212464, %v765
    %v775 = vor.u32 %v773, %v774
    %v776 = vshll.u32 2102212464, %v764
    %v777 = vshrl.u32 920167782, %v765
    %v778 = vor.u32 %v776, %v777
    %v779 = vshll.u32 920167782, %v764
    %v780 = vshrl.u32 1326507024, %v765
    %v781 = vor.u32 %v779, %v780
    %vm782 = vcmp.lt.s32.totalorder %v763, 1
    %vm783 = vcmp.lt.s32.totalorder %v763, 2
    %vm784 = vcmp.lt.s32.totalorder %v763, 3
    %vm785 = vcmp.lt.s32.totalorder %v763, 4
    %v786 = vsel %vm782, %v766, %v769
    %v787 = vsel %vm785, %v775, 2102212464
    %v788 = vsel %vm784, %v772, %v787
    %v789 = vsel %vm783, %v786, %v788
    %v790 = vsel %vm782, %v769, %v772
    %v791 = vsel %vm785, %v778, 920167782
    %v792 = vsel %vm784, %v775, %v791
    %v793 = vsel %vm783, %v790, %v792
    %v794 = vsel %vm782, %v772, %v775
    %v795 = vsel %vm785, %v781, 1326507024
    %v796 = vsel %vm784, %v778, %v795
    %v797 = vsel %vm783, %v794, %v796
    %v798 = vshll.u32 %v758, 8
    %v799 = vand.u32 %v798, 65535
    %v800 = vshrl.u32 %v798, 16
    %v801 = vand.u32 %v797, 65535
    %v802 = vshrl.u32 %v797, 16
    %v803 = vmul.u32 %v799, %v801
    %v804 = vmul.u32 %v799, %v802
    %v805 = vmul.u32 %v800, %v801
    %v806 = vmul.u32 %v800, %v802
    %v807 = vshll.u32 %v804, 16
    %v808 = vshrl.u32 %v804, 16
    %v809 = vshll.u32 %v805, 16
    %v810 = vshrl.u32 %v805, 16
    %vm811 = vc.u32 %v803, %v807
    %v812 = vsel %vm811, 1, 0
    %v813 = vadd.s32 %v803, %v807
    %v814 = vadd.s32 %v806, %v812
    %vm815 = vc.u32 %v813, %v809
    %v816 = vsel %vm815, 1, 0
    %v817 = vadd.s32 %v813, %v809
    %v818 = vadd.s32 %v814, %v816
    %v819 = vadd.s32 %v818, %v808
    %v820 = vadd.s32 %v819, %v810
    %v821 = vand.u32 %v798, 65535
    %v822 = vshrl.u32 %v798, 16
    %v823 = vand.u32 %v793, 65535
    %v824 = vshrl.u32 %v793, 16
    %v825 = vmul.u32 %v821, %v823
    %v826 = vmul.u32 %v821, %v824
    %v827 = vmul.u32 %v822, %v823
    %v828 = vmul.u32 %v822, %v824
    %v829 = vshll.u32 %v826, 16
    %v830 = vshrl.u32 %v826, 16
    %v831 = vshll.u32 %v827, 16
    %v832 = vshrl.u32 %v827, 16
    %vm833 = vc.u32 %v825, %v829
    %v834 = vsel %vm833, 1, 0
    %v835 = vadd.s32 %v825, %v829
    %v836 = vadd.s32 %v828, %v834
    %vm837 = vc.u32 %v835, %v831
    %v838 = vsel %vm837, 1, 0
    %v839 = vadd.s32 %v835, %v831
    %v840 = vadd.s32 %v836, %v838
    %v841 = vadd.s32 %v840, %v830
    %v842 = vadd.s32 %v841, %v832
    %v843 = vmul.u32 %v798, %v789
    %v844 = vadd.s32 %v820, %v839
    %vm845 = vc.u32 %v820, %v839
    %v846 = vadd.s32 %v842, 1
    %v847 = vsel %vm845, %v846, %v842
    %v848 = vadd.s32 %v843, %v847
    %v849 = vadd.s32 %v848, 536870912
    %v850 = vshrl.u32 %v849, 30
    %v851 = vshll.u32 %v850, 30
    %v852 = vsub.s32 %v848, %v851
    %vm853 = vcmp.lt.s32.totalorder %v852, 0
    %v854 = vsub.s32 0, %v852
    %v855 = vsel %vm853, %v854, %v852
    %v856 = vclz %v855
    %v857 = vsub.s32 %v856, 2
    %vm858 = vcmp.gt.s32.totalorder 0, %v857
    %v859 = vsel %vm858, 0, %v857
    %v860 = vsub.s32 32, %v859
    %v861 = vshll.u32 %v852, %v859
    %v862 = vshrl.u32 %v844, %v860
    %v863 = vor.u32 %v861, %v862
    %v864 = vsub.s32 4294967266, %v859
    %v865 = vadd.s32 %v864, 127
    %v866 = vshll.u32 %v865, 23
    %v867 = vor.u32 4788187, %v866
    %v868 = vand.u32 2147483647, %v867
    %v870 = vcvt.s32.f32 %v863
    %v871 = vmul.f32 %v870, %v868
    %v872 = vxor.u32 %v871, 2147483648
    %v873 = vsel %vm752, %v872, %v871
    %v874 = vsub.s32 4, %v850
    %v875 = vsel %vm752, %v874, %v850
    %v876 = vsel %vm751, %v283, %v873
    %v877 = vsel %vm751, 0, %v875
    %v878 = vmul.f32 %v876, %v876
    %v879 = vmul.f32 %v878, -0.001358992
    %v880 = vadd.f32 %v879, 0.041655596
    %v881 = vmul.f32 %v878, %v880
    %v882 = vadd.f32 %v881, -0.4999988
    %v883 = vmul.f32 %v878, %v882
    %v884 = vadd.f32 1.0, %v883
    %v885 = vmul.f32 %v876, %v876
    %v886 = vmul.f32 %v885, -0.00019511016
    %v887 = vadd.f32 %v886, 0.008332121
    %v888 = vmul.f32 %v885, %v887
    %v889 = vadd.f32 %v888, -0.16666654
    %v890 = vmul.f32 %v885, %v889
    %v891 = vadd.f32 %v890, 1.0
    %v892 = vmul.f32 %v891, %v876
    %vm893 = vweird.f32 %v283
    %v894 = vand.u32 %v877, 3
    %vm895 = vcmp.lt.s32.totalorder %v894, 2
    %vm896 = vcmp.eq.s32.totalorder %v894, 0
    %v897 = vxor.u32 %v892, 2147483648
    %v898 = vsel %vm896, %v884, %v897
    %vm899 = vcmp.eq.s32.totalorder %v894, 2
    %v900 = vxor.u32 %v884, 2147483648
    %v901 = vsel %vm899, %v900, %v892
    %v902 = vsel %vm895, %v898, %v901
    %v903 = vsel %vm893, nan, %v902
    %v904 = vand.u32 2147483647, %v284
    %vm905 = vcmp.le.f32.partialorder %v904, 0.7853982
    %vm906 = vcmp.lt.s32.totalorder %v284, 0
    %v907 = vand.u32 %v284, 2139095040
    %v908 = vshrl.u32 %v907, 23
    %v909 = vsub.s32 %v908, 127
    %v910 = vand.u32 2147483647, %v284
    %v911 = vand.u32 %v910, 8388607
    %v912 = vor.u32 %v911, 8388608
    %v913 = vsub.s32 0, %v912
    %v914 = vadd.s32 %v909, 1
    %vm915 = vcmp.gt.s32.totalorder %v914, 0
    %v916 = vsel %vm915, %v914, 0
    %v917 = vshrl.u32 %v916, 5
    %v918 = vand.u32 %v916, 31
    %v919 = vsub.s32 32, %v918
    %v920 = vshrl.u32 683565275, %v919
    %v921 = vshll.u32 683565275, %v918
    %v922 = vshrl.u32 2475754826, %v919
    %v923 = vor.u32 %v921, %v922
    %v924 = vshll.u32 2475754826, %v918
    %v925 = vshrl.u32 2131351028, %v919
    %v926 = vor.u32 %v924, %v925
    %v927 = vshll.u32 2131351028, %v918
    %v928 = vshrl.u32 2102212464, %v919
    %v929 = vor.u32 %v927, %v928
    %v930 = vshll.u32 2102212464, %v918
    %v931 = vshrl.u32 920167782, %v919
    %v932 = vor.u32 %v930, %v931
    %v933 = vshll.u32 920167782, %v918
    %v934 = vshrl.u32 1326507024, %v919
    %v935 = vor.u32 %v933, %v934
    %vm936 = vcmp.lt.s32.totalorder %v917, 1
    %vm937 = vcmp.lt.s32.totalorder %v917, 2
    %vm938 = vcmp.lt.s32.totalorder %v917, 3
    %vm939 = vcmp.lt.s32.totalorder %v917, 4
    %v940 = vsel %vm936, %v920, %v923
    %v941 = vsel %vm939, %v929, 2102212464
    %v942 = vsel %vm938, %v926, %v941
    %v943 = vsel %vm937, %v940, %v942
    %v944 = vsel %vm936, %v923, %v926
    %v945 = vsel %vm939, %v932, 920167782
    %v946 = vsel %vm938, %v929, %v945
    %v947 = vsel %vm937, %v944, %v946
    %v948 = vsel %vm936, %v926, %v929
    %v949 = vsel %vm939, %v935, 1326507024
    %v950 = vsel %vm938, %v932, %v949
    %v951 = vsel %vm937, %v948, %v950
    %v952 = vshll.u32 %v912, 8
    %v953 = vand.u32 %v952, 65535
    %v954 = vshrl.u32 %v952, 16
    %v955 = vand.u32 %v951, 65535
    %v956 = vshrl.u32 %v951, 16
    %v957 = vmul.u32 %v953, %v955
    %v958 = vmul.u32 %v953, %v956
    %v959 = vmul.u32 %v954, %v955
    %v960 = vmul.u32 %v954, %v956
    %v961 = vshll.u32 %v958, 16
    %v962 = vshrl.u32 %v958, 16
    %v963 = vshll.u32 %v959, 16
    %v964 = vshrl.u32 %v959, 16
    %vm965 = vc.u32 %v957, %v961
    %v966 = vsel %vm965, 1, 0
    %v967 = vadd.s32 %v957, %v961
    %v968 = vadd.s32 %v960, %v966
    %vm969 = vc.u32 %v967, %v963
    %v970 = vsel %vm969, 1, 0
    %v971 = vadd.s32 %v967, %v963
    %v972 = vadd.s32 %v968, %v970
    %v973 = vadd.s32 %v972, %v962
    %v974 = vadd.s32 %v973, %v964
    %v975 = vand.u32 %v952, 65535
    %v976 = vshrl.u32 %v952, 16
    %v977 = vand.u32 %v947, 65535
    %v978 = vshrl.u32 %v947, 16
    %v979 = vmul.u32 %v975, %v977
    %v980 = vmul.u32 %v975, %v978
    %v981 = vmul.u32 %v976, %v977
    %v982 = vmul.u32 %v976, %v978
    %v983 = vshll.u32 %v980, 16
    %v984 = vshrl.u32 %v980, 16
    %v985 = vshll.u32 %v981, 16
    %v986 = vshrl.u32 %v981, 16
    %vm987 = vc.u32 %v979, %v983
    %v988 = vsel %vm987, 1, 0
    %v989 = vadd.s32 %v979, %v983
    %v990 = vadd.s32 %v982, %v988
    %vm991 = vc.u32 %v989, %v985
    %v992 = vsel %vm991, 1, 0
    %v993 = vadd.s32 %v989, %v985
    %v994 = vadd.s32 %v990, %v992
    %v995 = vadd.s32 %v994, %v984
    %v996 = vadd.s32 %v995, %v986
    %v997 = vmul.u32 %v952, %v943
    %v998 = vadd.s32 %v974, %v993
    %vm999 = vc.u32 %v974, %v993
    %v1000 = vadd.s32 %v996, 1
    %v1001 = vsel %vm999, %v1000, %v996
    %v1002 = vadd.s32 %v997, %v1001
    %v1003 = vadd.s32 %v1002, 536870912
    %v1004 = vshrl.u32 %v1003, 30
    %v1005 = vshll.u32 %v1004, 30
    %v1006 = vsub.s32 %v1002, %v1005
    %vm1007 = vcmp.lt.s32.totalorder %v1006, 0
    %v1008 = vsub.s32 0, %v1006
    %v1009 = vsel %vm1007, %v1008, %v1006
    %v1010 = vclz %v1009
    %v1011 = vsub.s32 %v1010, 2
    %vm1012 = vcmp.gt.s32.totalorder 0, %v1011
    %v1013 = vsel %vm1012, 0, %v1011
    %v1014 = vsub.s32 32, %v1013
    %v1015 = vshll.u32 %v1006, %v1013
    %v1016 = vshrl.u32 %v998, %v1014
    %v1017 = vor.u32 %v1015, %v1016
    %v1018 = vsub.s32 4294967266, %v1013
    %v1019 = vadd.s32 %v1018, 127
    %v1020 = vshll.u32 %v1019, 23
    %v1021 = vor.u32 4788187, %v1020
    %v1022 = vand.u32 2147483647, %v1021
    %v1024 = vcvt.s32.f32 %v1017
    %v1025 = vmul.f32 %v1024, %v1022
    %v1026 = vxor.u32 %v1025, 2147483648
    %v1027 = vsel %vm906, %v1026, %v1025
    %v1028 = vsub.s32 4, %v1004
    %v1029 = vsel %vm906, %v1028, %v1004
    %v1030 = vsel %vm905, %v284, %v1027
    %v1031 = vsel %vm905, 0, %v1029
    %v1032 = vmul.f32 %v1030, %v1030
    %v1033 = vmul.f32 %v1032, -0.001358992
    %v1034 = vadd.f32 %v1033, 0.041655596
    %v1035 = vmul.f32 %v1032, %v1034
    %v1036 = vadd.f32 %v1035, -0.4999988
    %v1037 = vmul.f32 %v1032, %v1036
    %v1038 = vadd.f32 1.0, %v1037
    %v1039 = vmul.f32 %v1030, %v1030
    %v1040 = vmul.f32 %v1039, -0.00019511016
    %v1041 = vadd.f32 %v1040, 0.008332121
    %v1042 = vmul.f32 %v1039, %v1041
    %v1043 = vadd.f32 %v1042, -0.16666654
    %v1044 = vmul.f32 %v1039, %v1043
    %v1045 = vadd.f32 %v1044, 1.0
    %v1046 = vmul.f32 %v1045, %v1030
    %vm1047 = vweird.f32 %v284
    %v1048 = vand.u32 %v1031, 3
    %vm1049 = vcmp.lt.s32.totalorder %v1048, 2
    %vm1050 = vcmp.eq.s32.totalorder %v1048, 0
    %v1051 = vxor.u32 %v1046, 2147483648
    %v1052 = vsel %vm1050, %v1038, %v1051
    %vm1053 = vcmp.eq.s32.totalorder %v1048, 2
    %v1054 = vxor.u32 %v1038, 2147483648
    %v1055 = vsel %vm1053, %v1054, %v1046
    %v1056 = vsel %vm1049, %v1052, %v1055
    %v1057 = vsel %vm1047, nan, %v1056
    %v1058 = vand.u32 2147483647, %v285
    %vm1059 = vcmp.le.f32.partialorder %v1058, 0.7853982
    %vm1060 = vcmp.lt.s32.totalorder %v285, 0
    %v1061 = vand.u32 %v285, 2139095040
    %v1062 = vshrl.u32 %v1061, 23
    %v1063 = vsub.s32 %v1062, 127
    %v1064 = vand.u32 2147483647, %v285
    %v1065 = vand.u32 %v1064, 8388607
    %v1066 = vor.u32 %v1065, 8388608
    %v1067 = vsub.s32 0, %v1066
    %v1068 = vadd.s32 %v1063, 1
    %vm1069 = vcmp.gt.s32.totalorder %v1068, 0
    %v1070 = vsel %vm1069, %v1068, 0
    %v1071 = vshrl.u32 %v1070, 5
    %v1072 = vand.u32 %v1070, 31
    %v1073 = vsub.s32 32, %v1072
    %v1074 = vshrl.u32 683565275, %v1073
    %v1075 = vshll.u32 683565275, %v1072
    %v1076 = vshrl.u32 2475754826, %v1073
    %v1077 = vor.u32 %v1075, %v1076
    %v1078 = vshll.u32 2475754826, %v1072
    %v1079 = vshrl.u32 2131351028, %v1073
    %v1080 = vor.u32 %v1078, %v1079
    %v1081 = vshll.u32 2131351028, %v1072
    %v1082 = vshrl.u32 2102212464, %v1073
    %v1083 = vor.u32 %v1081, %v1082
    %v1084 = vshll.u32 2102212464, %v1072
    %v1085 = vshrl.u32 920167782, %v1073
    %v1086 = vor.u32 %v1084, %v1085
    %v1087 = vshll.u32 920167782, %v1072
    %v1088 = vshrl.u32 1326507024, %v1073
    %v1089 = vor.u32 %v1087, %v1088
    %vm1090 = vcmp.lt.s32.totalorder %v1071, 1
    %vm1091 = vcmp.lt.s32.totalorder %v1071, 2
    %vm1092 = vcmp.lt.s32.totalorder %v1071, 3
    %vm1093 = vcmp.lt.s32.totalorder %v1071, 4
    %v1094 = vsel %vm1090, %v1074, %v1077
    %v1095 = vsel %vm1093, %v1083, 2102212464
    %v1096 = vsel %vm1092, %v1080, %v1095
    %v1097 = vsel %vm1091, %v1094, %v1096
    %v1098 = vsel %vm1090, %v1077, %v1080
    %v1099 = vsel %vm1093, %v1086, 920167782
    %v1100 = vsel %vm1092, %v1083, %v1099
    %v1101 = vsel %vm1091, %v1098, %v1100
    %v1102 = vsel %vm1090, %v1080, %v1083
    %v1103 = vsel %vm1093, %v1089, 1326507024
    %v1104 = vsel %vm1092, %v1086, %v1103
    %v1105 = vsel %vm1091, %v1102, %v1104
    %v1106 = vshll.u32 %v1066, 8
    %v1107 = vand.u32 %v1106, 65535
    %v1108 = vshrl.u32 %v1106, 16
    %v1109 = vand.u32 %v1105, 65535
    %v1110 = vshrl.u32 %v1105, 16
    %v1111 = vmul.u32 %v1107, %v1109
    %v1112 = vmul.u32 %v1107, %v1110
    %v1113 = vmul.u32 %v1108, %v1109
    %v1114 = vmul.u32 %v1108, %v1110
    %v1115 = vshll.u32 %v1112, 16
    %v1116 = vshrl.u32 %v1112, 16
    %v1117 = vshll.u32 %v1113, 16
    %v1118 = vshrl.u32 %v1113, 16
    %vm1119 = vc.u32 %v1111, %v1115
    %v1120 = vsel %vm1119, 1, 0
    %v1121 = vadd.s32 %v1111, %v1115
    %v1122 = vadd.s32 %v1114, %v1120
    %vm1123 = vc.u32 %v1121, %v1117
    %v1124 = vsel %vm1123, 1, 0
    %v1125 = vadd.s32 %v1121, %v1117
    %v1126 = vadd.s32 %v1122, %v1124
    %v1127 = vadd.s32 %v1126, %v1116
    %v1128 = vadd.s32 %v1127, %v1118
    %v1129 = vand.u32 %v1106, 65535
    %v1130 = vshrl.u32 %v1106, 16
    %v1131 = vand.u32 %v1101, 65535
    %v1132 = vshrl.u32 %v1101, 16
    %v1133 = vmul.u32 %v1129, %v1131
    %v1134 = vmul.u32 %v1129, %v1132
    %v1135 = vmul.u32 %v1130, %v1131
    %v1136 = vmul.u32 %v1130, %v1132
    %v1137 = vshll.u32 %v1134, 16
    %v1138 = vshrl.u32 %v1134, 16
    %v1139 = vshll.u32 %v1135, 16
    %v1140 = vshrl.u32 %v1135, 16
    %vm1141 = vc.u32 %v1133, %v1137
    %v1142 = vsel %vm1141, 1, 0
    %v1143 = vadd.s32 %v1133, %v1137
    %v1144 = vadd.s32 %v1136, %v1142
    %vm1145 = vc.u32 %v1143, %v1139
    %v1146 = vsel %vm1145, 1, 0
    %v1147 = vadd.s32 %v1143, %v1139
    %v1148 = vadd.s32 %v1144, %v1146
    %v1149 = vadd.s32 %v1148, %v1138
    %v1150 = vadd.s32 %v1149, %v1140
    %v1151 = vmul.u32 %v1106, %v1097
    %v1152 = vadd.s32 %v1128, %v1147
    %vm1153 = vc.u32 %v1128, %v1147
    %v1154 = vadd.s32 %v1150, 1
    %v1155 = vsel %vm1153, %v1154, %v1150
    %v1156 = vadd.s32 %v1151, %v1155
    %v1157 = vadd.s32 %v1156, 536870912
    %v1158 = vshrl.u32 %v1157, 30
    %v1159 = vshll.u32 %v1158, 30
    %v1160 = vsub.s32 %v1156, %v1159
    %vm1161 = vcmp.lt.s32.totalorder %v1160, 0
    %v1162 = vsub.s32 0, %v1160
    %v1163 = vsel %vm1161, %v1162, %v1160
    %v1164 = vclz %v1163
    %v1165 = vsub.s32 %v1164, 2
    %vm1166 = vcmp.gt.s32.totalorder 0, %v1165
    %v1167 = vsel %vm1166, 0, %v1165
    %v1168 = vsub.s32 32, %v1167
    %v1169 = vshll.u32 %v1160, %v1167
    %v1170 = vshrl.u32 %v1152, %v1168
    %v1171 = vor.u32 %v1169, %v1170
    %v1172 = vsub.s32 4294967266, %v1167
    %v1173 = vadd.s32 %v1172, 127
    %v1174 = vshll.u32 %v1173, 23
    %v1175 = vor.u32 4788187, %v1174
    %v1176 = vand.u32 2147483647, %v1175
    %v1178 = vcvt.s32.f32 %v1171
    %v1179 = vmul.f32 %v1178, %v1176
    %v1180 = vxor.u32 %v1179, 2147483648
    %v1181 = vsel %vm1060, %v1180, %v1179
    %v1182 = vsub.s32 4, %v1158
    %v1183 = vsel %vm1060, %v1182, %v1158
    %v1184 = vsel %vm1059, %v285, %v1181
    %v1185 = vsel %vm1059, 0, %v1183
    %v1186 = vmul.f32 %v1184, %v1184
    %v1187 = vmul.f32 %v1186, -0.001358992
    %v1188 = vadd.f32 %v1187, 0.041655596
    %v1189 = vmul.f32 %v1186, %v1188
    %v1190 = vadd.f32 %v1189, -0.4999988
    %v1191 = vmul.f32 %v1186, %v1190
    %v1192 = vadd.f32 1.0, %v1191
    %v1193 = vmul.f32 %v1184, %v1184
    %v1194 = vmul.f32 %v1193, -0.00019511016
    %v1195 = vadd.f32 %v1194, 0.008332121
    %v1196 = vmul.f32 %v1193, %v1195
    %v1197 = vadd.f32 %v1196, -0.16666654
    %v1198 = vmul.f32 %v1193, %v1197
    %v1199 = vadd.f32 %v1198, 1.0
    %v1200 = vmul.f32 %v1199, %v1184
    %vm1201 = vweird.f32 %v285
    %v1202 = vand.u32 %v1185, 3
    %vm1203 = vcmp.lt.s32.totalorder %v1202, 2
    %vm1204 = vcmp.eq.s32.totalorder %v1202, 0
    %v1205 = vxor.u32 %v1200, 2147483648
    %v1206 = vsel %vm1204, %v1192, %v1205
    %vm1207 = vcmp.eq.s32.totalorder %v1202, 2
    %v1208 = vxor.u32 %v1192, 2147483648
    %v1209 = vsel %vm1207, %v1208, %v1200
    %v1210 = vsel %vm1203, %v1206, %v1209
    %v1211 = vsel %vm1201, nan, %v1210
    %v1212 = vand.u32 2147483647, %v286
    %vm1213 = vcmp.le.f32.partialorder %v1212, 0.7853982
    %vm1214 = vcmp.lt.s32.totalorder %v286, 0
    %v1215 = vand.u32 %v286, 2139095040
    %v1216 = vshrl.u32 %v1215, 23
    %v1217 = vsub.s32 %v1216, 127
    %v1218 = vand.u32 2147483647, %v286
    %v1219 = vand.u32 %v1218, 8388607
    %v1220 = vor.u32 %v1219, 8388608
    %v1221 = vsub.s32 0, %v1220
    %v1222 = vadd.s32 %v1217, 1
    %vm1223 = vcmp.gt.s32.totalorder %v1222, 0
    %v1224 = vsel %vm1223, %v1222, 0
    %v1225 = vshrl.u32 %v1224, 5
    %v1226 = vand.u32 %v1224, 31
    %v1227 = vsub.s32 32, %v1226
    %v1228 = vshrl.u32 683565275, %v1227
    %v1229 = vshll.u32 683565275, %v1226
    %v1230 = vshrl.u32 2475754826, %v1227
    %v1231 = vor.u32 %v1229, %v1230
    %v1232 = vshll.u32 2475754826, %v1226
    %v1233 = vshrl.u32 2131351028, %v1227
    %v1234 = vor.u32 %v1232, %v1233
    %v1235 = vshll.u32 2131351028, %v1226
    %v1236 = vshrl.u32 2102212464, %v1227
    %v1237 = vor.u32 %v1235, %v1236
    %v1238 = vshll.u32 2102212464, %v1226
    %v1239 = vshrl.u32 920167782, %v1227
    %v1240 = vor.u32 %v1238, %v1239
    %v1241 = vshll.u32 920167782, %v1226
    %v1242 = vshrl.u32 1326507024, %v1227
    %v1243 = vor.u32 %v1241, %v1242
    %vm1244 = vcmp.lt.s32.totalorder %v1225, 1
    %vm1245 = vcmp.lt.s32.totalorder %v1225, 2
    %vm1246 = vcmp.lt.s32.totalorder %v1225, 3
    %vm1247 = vcmp.lt.s32.totalorder %v1225, 4
    %v1248 = vsel %vm1244, %v1228, %v1231
    %v1249 = vsel %vm1247, %v1237, 2102212464
    %v1250 = vsel %vm1246, %v1234, %v1249
    %v1251 = vsel %vm1245, %v1248, %v1250
    %v1252 = vsel %vm1244, %v1231, %v1234
    %v1253 = vsel %vm1247, %v1240, 920167782
    %v1254 = vsel %vm1246, %v1237, %v1253
    %v1255 = vsel %vm1245, %v1252, %v1254
    %v1256 = vsel %vm1244, %v1234, %v1237
    %v1257 = vsel %vm1247, %v1243, 1326507024
    %v1258 = vsel %vm1246, %v1240, %v1257
    %v1259 = vsel %vm1245, %v1256, %v1258
    %v1260 = vshll.u32 %v1220, 8
    %v1261 = vand.u32 %v1260, 65535
    %v1262 = vshrl.u32 %v1260, 16
    %v1263 = vand.u32 %v1259, 65535
    %v1264 = vshrl.u32 %v1259, 16
    %v1265 = vmul.u32 %v1261, %v1263
    %v1266 = vmul.u32 %v1261, %v1264
    %v1267 = vmul.u32 %v1262, %v1263
    %v1268 = vmul.u32 %v1262, %v1264
    %v1269 = vshll.u32 %v1266, 16
    %v1270 = vshrl.u32 %v1266, 16
    %v1271 = vshll.u32 %v1267, 16
    %v1272 = vshrl.u32 %v1267, 16
    %vm1273 = vc.u32 %v1265, %v1269
    %v1274 = vsel %vm1273, 1, 0
    %v1275 = vadd.s32 %v1265, %v1269
    %v1276 = vadd.s32 %v1268, %v1274
    %vm1277 = vc.u32 %v1275, %v1271
    %v1278 = vsel %vm1277, 1, 0
    %v1279 = vadd.s32 %v1275, %v1271
    %v1280 = vadd.s32 %v1276, %v1278
    %v1281 = vadd.s32 %v1280, %v1270
    %v1282 = vadd.s32 %v1281, %v1272
    %v1283 = vand.u32 %v1260, 65535
    %v1284 = vshrl.u32 %v1260, 16
    %v1285 = vand.u32 %v1255, 65535
    %v1286 = vshrl.u32 %v1255, 16
    %v1287 = vmul.u32 %v1283, %v1285
    %v1288 = vmul.u32 %v1283, %v1286
    %v1289 = vmul.u32 %v1284, %v1285
    %v1290 = vmul.u32 %v1284, %v1286
    %v1291 = vshll.u32 %v1288, 16
    %v1292 = vshrl.u32 %v1288, 16
    %v1293 = vshll.u32 %v1289, 16
    %v1294 = vshrl.u32 %v1289, 16
    %vm1295 = vc.u32 %v1287, %v1291
    %v1296 = vsel %vm1295, 1, 0
    %v1297 = vadd.s32 %v1287, %v1291
    %v1298 = vadd.s32 %v1290, %v1296
    %vm1299 = vc.u32 %v1297, %v1293
    %v1300 = vsel %vm1299, 1, 0
    %v1301 = vadd.s32 %v1297, %v1293
    %v1302 = vadd.s32 %v1298, %v1300
    %v1303 = vadd.s32 %v1302, %v1292
    %v1304 = vadd.s32 %v1303, %v1294
    %v1305 = vmul.u32 %v1260, %v1251
    %v1306 = vadd.s32 %v1282, %v1301
    %vm1307 = vc.u32 %v1282, %v1301
    %v1308 = vadd.s32 %v1304, 1
    %v1309 = vsel %vm1307, %v1308, %v1304
    %v1310 = vadd.s32 %v1305, %v1309
    %v1311 = vadd.s32 %v1310, 536870912
    %v1312 = vshrl.u32 %v1311, 30
    %v1313 = vshll.u32 %v1312, 30
    %v1314 = vsub.s32 %v1310, %v1313
    %vm1315 = vcmp.lt.s32.totalorder %v1314, 0
    %v1316 = vsub.s32 0, %v1314
    %v1317 = vsel %vm1315, %v1316, %v1314
    %v1318 = vclz %v1317
    %v1319 = vsub.s32 %v1318, 2
    %vm1320 = vcmp.gt.s32.totalorder 0, %v1319
    %v1321 = vsel %vm1320, 0, %v1319
    %v1322 = vsub.s32 32, %v1321
    %v1323 = vshll.u32 %v1314, %v1321
    %v1324 = vshrl.u32 %v1306, %v1322
    %v1325 = vor.u32 %v1323, %v1324
    %v1326 = vsub.s32 4294967266, %v1321
    %v1327 = vadd.s32 %v1326, 127
    %v1328 = vshll.u32 %v1327, 23
    %v1329 = vor.u32 4788187, %v1328
    %v1330 = vand.u32 2147483647, %v1329
    %v1332 = vcvt.s32.f32 %v1325
    %v1333 = vmul.f32 %v1332, %v1330
    %v1334 = vxor.u32 %v1333, 2147483648
    %v1335 = vsel %vm1214, %v1334, %v1333
    %v1336 = vsub.s32 4, %v1312
    %v1337 = vsel %vm1214, %v1336, %v1312
    %v1338 = vsel %vm1213, %v286, %v1335
    %v1339 = vsel %vm1213, 0, %v1337
    %v1340 = vmul.f32 %v1338, %v1338
    %v1341 = vmul.f32 %v1340, -0.001358992
    %v1342 = vadd.f32 %v1341, 0.041655596
    %v1343 = vmul.f32 %v1340, %v1342
    %v1344 = vadd.f32 %v1343, -0.4999988
    %v1345 = vmul.f32 %v1340, %v1344
    %v1346 = vadd.f32 1.0, %v1345
    %v1347 = vmul.f32 %v1338, %v1338
    %v1348 = vmul.f32 %v1347, -0.00019511016
    %v1349 = vadd.f32 %v1348, 0.008332121
    %v1350 = vmul.f32 %v1347, %v1349
    %v1351 = vadd.f32 %v1350, -0.16666654
    %v1352 = vmul.f32 %v1347, %v1351
    %v1353 = vadd.f32 %v1352, 1.0
    %v1354 = vmul.f32 %v1353, %v1338
    %vm1355 = vweird.f32 %v286
    %v1356 = vand.u32 %v1339, 3
    %vm1357 = vcmp.lt.s32.totalorder %v1356, 2
    %vm1358 = vcmp.eq.s32.totalorder %v1356, 0
    %v1359 = vxor.u32 %v1354, 2147483648
    %v1360 = vsel %vm1358, %v1346, %v1359
    %vm1361 = vcmp.eq.s32.totalorder %v1356, 2
    %v1362 = vxor.u32 %v1346, 2147483648
    %v1363 = vsel %vm1361, %v1362, %v1354
    %v1364 = vsel %vm1357, %v1360, %v1363
    %v1365 = vsel %vm1355, nan, %v1364
    %v1366 = vand.u32 2147483647, %v287
    %vm1367 = vcmp.le.f32.partialorder %v1366, 0.7853982
    %vm1368 = vcmp.lt.s32.totalorder %v287, 0
    %v1369 = vand.u32 %v287, 2139095040
    %v1370 = vshrl.u32 %v1369, 23
    %v1371 = vsub.s32 %v1370, 127
    %v1372 = vand.u32 2147483647, %v287
    %v1373 = vand.u32 %v1372, 8388607
    %v1374 = vor.u32 %v1373, 8388608
    %v1375 = vsub.s32 0, %v1374
    %v1376 = vadd.s32 %v1371, 1
    %vm1377 = vcmp.gt.s32.totalorder %v1376, 0
    %v1378 = vsel %vm1377, %v1376, 0
    %v1379 = vshrl.u32 %v1378, 5
    %v1380 = vand.u32 %v1378, 31
    %v1381 = vsub.s32 32, %v1380
    %v1382 = vshrl.u32 683565275, %v1381
    %v1383 = vshll.u32 683565275, %v1380
    %v1384 = vshrl.u32 2475754826, %v1381
    %v1385 = vor.u32 %v1383, %v1384
    %v1386 = vshll.u32 2475754826, %v1380
    %v1387 = vshrl.u32 2131351028, %v1381
    %v1388 = vor.u32 %v1386, %v1387
    %v1389 = vshll.u32 2131351028, %v1380
    %v1390 = vshrl.u32 2102212464, %v1381
    %v1391 = vor.u32 %v1389, %v1390
    %v1392 = vshll.u32 2102212464, %v1380
    %v1393 = vshrl.u32 920167782, %v1381
    %v1394 = vor.u32 %v1392, %v1393
    %v1395 = vshll.u32 920167782, %v1380
    %v1396 = vshrl.u32 1326507024, %v1381
    %v1397 = vor.u32 %v1395, %v1396
    %vm1398 = vcmp.lt.s32.totalorder %v1379, 1
    %vm1399 = vcmp.lt.s32.totalorder %v1379, 2
    %vm1400 = vcmp.lt.s32.totalorder %v1379, 3
    %vm1401 = vcmp.lt.s32.totalorder %v1379, 4
    %v1402 = vsel %vm1398, %v1382, %v1385
    %v1403 = vsel %vm1401, %v1391, 2102212464
    %v1404 = vsel %vm1400, %v1388, %v1403
    %v1405 = vsel %vm1399, %v1402, %v1404
    %v1406 = vsel %vm1398, %v1385, %v1388
    %v1407 = vsel %vm1401, %v1394, 920167782
    %v1408 = vsel %vm1400, %v1391, %v1407
    %v1409 = vsel %vm1399, %v1406, %v1408
    %v1410 = vsel %vm1398, %v1388, %v1391
    %v1411 = vsel %vm1401, %v1397, 1326507024
    %v1412 = vsel %vm1400, %v1394, %v1411
    %v1413 = vsel %vm1399, %v1410, %v1412
    %v1414 = vshll.u32 %v1374, 8
    %v1415 = vand.u32 %v1414, 65535
    %v1416 = vshrl.u32 %v1414, 16
    %v1417 = vand.u32 %v1413, 65535
    %v1418 = vshrl.u32 %v1413, 16
    %v1419 = vmul.u32 %v1415, %v1417
    %v1420 = vmul.u32 %v1415, %v1418
    %v1421 = vmul.u32 %v1416, %v1417
    %v1422 = vmul.u32 %v1416, %v1418
    %v1423 = vshll.u32 %v1420, 16
    %v1424 = vshrl.u32 %v1420, 16
    %v1425 = vshll.u32 %v1421, 16
    %v1426 = vshrl.u32 %v1421, 16
    %vm1427 = vc.u32 %v1419, %v1423
    %v1428 = vsel %vm1427, 1, 0
    %v1429 = vadd.s32 %v1419, %v1423
    %v1430 = vadd.s32 %v1422, %v1428
    %vm1431 = vc.u32 %v1429, %v1425
    %v1432 = vsel %vm1431, 1, 0
    %v1433 = vadd.s32 %v1429, %v1425
    %v1434 = vadd.s32 %v1430, %v1432
    %v1435 = vadd.s32 %v1434, %v1424
    %v1436 = vadd.s32 %v1435, %v1426
    %v1437 = vand.u32 %v1414, 65535
    %v1438 = vshrl.u32 %v1414, 16
    %v1439 = vand.u32 %v1409, 65535
    %v1440 = vshrl.u32 %v1409, 16
    %v1441 = vmul.u32 %v1437, %v1439
    %v1442 = vmul.u32 %v1437, %v1440
    %v1443 = vmul.u32 %v1438, %v1439
    %v1444 = vmul.u32 %v1438, %v1440
    %v1445 = vshll.u32 %v1442, 16
    %v1446 = vshrl.u32 %v1442, 16
    %v1447 = vshll.u32 %v1443, 16
    %v1448 = vshrl.u32 %v1443, 16
    %vm1449 = vc.u32 %v1441, %v1445
    %v1450 = vsel %vm1449, 1, 0
    %v1451 = vadd.s32 %v1441, %v1445
    %v1452 = vadd.s32 %v1444, %v1450
    %vm1453 = vc.u32 %v1451, %v1447
    %v1454 = vsel %vm1453, 1, 0
    %v1455 = vadd.s32 %v1451, %v1447
    %v1456 = vadd.s32 %v1452, %v1454
    %v1457 = vadd.s32 %v1456, %v1446
    %v1458 = vadd.s32 %v1457, %v1448
    %v1459 = vmul.u32 %v1414, %v1405
    %v1460 = vadd.s32 %v1436, %v1455
    %vm1461 = vc.u32 %v1436, %v1455
    %v1462 = vadd.s32 %v1458, 1
    %v1463 = vsel %vm1461, %v1462, %v1458
    %v1464 = vadd.s32 %v1459, %v1463
    %v1465 = vadd.s32 %v1464, 536870912
    %v1466 = vshrl.u32 %v1465, 30
    %v1467 = vshll.u32 %v1466, 30
    %v1468 = vsub.s32 %v1464, %v1467
    %vm1469 = vcmp.lt.s32.totalorder %v1468, 0
    %v1470 = vsub.s32 0, %v1468
    %v1471 = vsel %vm1469, %v1470, %v1468
    %v1472 = vclz %v1471
    %v1473 = vsub.s32 %v1472, 2
    %vm1474 = vcmp.gt.s32.totalorder 0, %v1473
    %v1475 = vsel %vm1474, 0, %v1473
    %v1476 = vsub.s32 32, %v1475
    %v1477 = vshll.u32 %v1468, %v1475
    %v1478 = vshrl.u32 %v1460, %v1476
    %v1479 = vor.u32 %v1477, %v1478
    %v1480 = vsub.s32 4294967266, %v1475
    %v1481 = vadd.s32 %v1480, 127
    %v1482 = vshll.u32 %v1481, 23
    %v1483 = vor.u32 4788187, %v1482
    %v1484 = vand.u32 2147483647, %v1483
    %v1486 = vcvt.s32.f32 %v1479
    %v1487 = vmul.f32 %v1486, %v1484
    %v1488 = vxor.u32 %v1487, 2147483648
    %v1489 = vsel %vm1368, %v1488, %v1487
    %v1490 = vsub.s32 4, %v1466
    %v1491 = vsel %vm1368, %v1490, %v1466
    %v1492 = vsel %vm1367, %v287, %v1489
    %v1493 = vsel %vm1367, 0, %v1491
    %v1494 = vmul.f32 %v1492, %v1492
    %v1495 = vmul.f32 %v1494, -0.001358992
    %v1496 = vadd.f32 %v1495, 0.041655596
    %v1497 = vmul.f32 %v1494, %v1496
    %v1498 = vadd.f32 %v1497, -0.4999988
    %v1499 = vmul.f32 %v1494, %v1498
    %v1500 = vadd.f32 1.0, %v1499
    %v1501 = vmul.f32 %v1492, %v1492
    %v1502 = vmul.f32 %v1501, -0.00019511016
    %v1503 = vadd.f32 %v1502, 0.008332121
    %v1504 = vmul.f32 %v1501, %v1503
    %v1505 = vadd.f32 %v1504, -0.16666654
    %v1506 = vmul.f32 %v1501, %v1505
    %v1507 = vadd.f32 %v1506, 1.0
    %v1508 = vmul.f32 %v1507, %v1492
    %vm1509 = vweird.f32 %v287
    %v1510 = vand.u32 %v1493, 3
    %vm1511 = vcmp.lt.s32.totalorder %v1510, 2
    %vm1512 = vcmp.eq.s32.totalorder %v1510, 0
    %v1513 = vxor.u32 %v1508, 2147483648
    %v1514 = vsel %vm1512, %v1500, %v1513
    %vm1515 = vcmp.eq.s32.totalorder %v1510, 2
    %v1516 = vxor.u32 %v1500, 2147483648
    %v1517 = vsel %vm1515, %v1516, %v1508
    %v1518 = vsel %vm1511, %v1514, %v1517
    %v1519 = vsel %vm1509, nan, %v1518
    %v1520 = vpack.c.bf16 %v595, %v441
    %v1521 = vpack.c.bf16 %v903, %v749
    %v1522 = vpack.c.bf16 %v1211, %v1057
    %v1523 = vpack.c.bf16 %v1519, %v1365
    %v1524 = vld [vmem:[#allocation6] sm:$0xf]
    %v1525 = vld [vmem:[#allocation6 + $0x4] sm:$0xf]
    %v1526 = vld [vmem:[#allocation6 + $0x8] sm:$0xf]
    %v1527 = vld [vmem:[#allocation6 + $0xc] sm:$0xf]
    %v1528 = vld [vmem:[#allocation6 + $0x10] sm:$0xf]
    %v1529 = vld [vmem:[#allocation6 + $0x14] sm:$0xf]
    %v1530 = vld [vmem:[#allocation6 + $0x18] sm:$0xf]
    %v1531 = vld [vmem:[#allocation6 + $0x1c] sm:$0xf]
    %v1532 = vld [vmem:[%s8] sm:$0x1]
    %v1534 = vperm.slane %v1532, 0
    %v1544 = vunpack.c.l.b16 %v1524
    %v1545 = vunpack.c.l.b16 %v1525
    %v1546 = vunpack.c.l.b16 %v1526
    %v1547 = vunpack.c.l.b16 %v1527
    %v1548 = vunpack.c.l.b16 %v1528
    %v1549 = vunpack.c.l.b16 %v1529
    %v1550 = vunpack.c.l.b16 %v1530
    %v1551 = vunpack.c.l.b16 %v1531
    %v1552 = vpack.c.b16 %v1545, %v1544
    %v1553 = vpack.c.b16 %v1547, %v1546
    %v1554 = vpack.c.b16 %v1549, %v1548
    %v1555 = vpack.c.b16 %v1551, %v1550
    %vm1560 = vcmask 523264
    %v1562 = vsel %vm1560, %v1520, 0
    %v1565 = vsel %vm1560, %v1521, 0
    %v1568 = vsel %vm1560, %v1522, 0
    %v1571 = vsel %vm1560, %v1523, 0
    %1573 = vmatpush.bf16.msra.mxu0 0
    %1574 = vmatpush.bf16.msra.mxu0 0
    %1575 = vmatpush.bf16.msra.mxu0 0
    %1576 = vmatpush.bf16.msra.mxu0 0
    %1577 = vmatpush.bf16.msra.mxu0 %v1555
    %1578 = vmatpush.bf16.msra.mxu0 %v1554
    %1579 = vmatpush.bf16.msra.mxu0 %v1553
    %1580 = vmatpush.bf16.msra.mxu0 %v1552
    %1581 = vmatmul.bf16.gmra.mxu0 %v1562
    %v1582 = vpop.f32.mrf.mxu0
    %v1583 = vadd.f32 %v1534, %v1582
    %v1584 = vpop.f32.mrf.mxu0
    %v1585 = vadd.f32 %v1534, %v1584
    %1586 = vmatmul.bf16.gmra.mxu0 %v1565
    %v1587 = vpop.f32.mrf.mxu0
    %v1588 = vadd.f32 %v1534, %v1587
    %v1589 = vpop.f32.mrf.mxu0
    %v1590 = vadd.f32 %v1534, %v1589
    %1591 = vmatmul.bf16.gmra.mxu0 %v1568
    %v1592 = vpop.f32.mrf.mxu0
    %v1593 = vadd.f32 %v1534, %v1592
    %v1594 = vpop.f32.mrf.mxu0
    %v1595 = vadd.f32 %v1534, %v1594
    %1596 = vmatmul.bf16.gmra.mxu0 %v1571
    %v1597 = vpop.f32.mrf.mxu0
    %v1598 = vadd.f32 %v1534, %v1597
    %v1599 = vpop.f32.mrf.mxu0
    %v1600 = vadd.f32 %v1534, %v1599
    %1601 = vdwg.mxu0
    %v1602 = vmul.f32 %v212, %v1583
    %v1603 = vmul.f32 %v213, %v1585
    %v1604 = vmul.f32 %v214, %v1588
    %v1605 = vmul.f32 %v215, %v1590
    %v1606 = vmul.f32 %v216, %v1593
    %v1607 = vmul.f32 %v217, %v1595
    %v1608 = vmul.f32 %v218, %v1598
    %v1609 = vmul.f32 %v219, %v1600
    %v1610 = vpack.c.bf16 %v1603, %v1602
    %v1611 = vpack.c.bf16 %v1605, %v1604
    %v1612 = vpack.c.bf16 %v1607, %v1606
    %v1613 = vpack.c.bf16 %v1609, %v1608
    %v1614 = vld [vmem:[%s9] sm:$0xf]
    %v1615 = vld [vmem:[%s9 + $0x4] sm:$0xf]
    %v1616 = vld [vmem:[%s9 + $0x8] sm:$0xf]
    %v1617 = vld [vmem:[%s9 + $0xc] sm:$0xf]
    %v1618 = vld [vmem:[%s9 + $0x10] sm:$0xf]
    %v1619 = vld [vmem:[%s9 + $0x14] sm:$0xf]
    %v1620 = vld [vmem:[%s9 + $0x18] sm:$0xf]
    %v1621 = vld [vmem:[%s9 + $0x1c] sm:$0xf]
    %v1622 = vld [vmem:[%s9 + $0x20] sm:$0xf]
    %v1623 = vld [vmem:[%s9 + $0x24] sm:$0xf]
    %v1624 = vld [vmem:[%s9 + $0x28] sm:$0xf]
    %v1625 = vld [vmem:[%s9 + $0x2c] sm:$0xf]
    %v1626 = vld [vmem:[%s9 + $0x30] sm:$0xf]
    %v1627 = vld [vmem:[%s9 + $0x34] sm:$0xf]
    %v1628 = vld [vmem:[%s9 + $0x38] sm:$0xf]
    %v1629 = vld [vmem:[%s9 + $0x3c] sm:$0xf]
    %v1630 = vld [vmem:[%s10] sm:$0x1]
    %v1632 = vperm.slane %v1630, 0
    %v1650 = vunpack.c.l.b16 %v1614
    %v1651 = vunpack.c.l.b16 %v1615
    %v1652 = vunpack.c.l.b16 %v1616
    %v1653 = vunpack.c.l.b16 %v1617
    %v1654 = vunpack.c.l.b16 %v1618
    %v1655 = vunpack.c.l.b16 %v1619
    %v1656 = vunpack.c.l.b16 %v1620
    %v1657 = vunpack.c.l.b16 %v1621
    %v1658 = vunpack.c.l.b16 %v1622
    %v1659 = vunpack.c.l.b16 %v1623
    %v1660 = vunpack.c.l.b16 %v1624
    %v1661 = vunpack.c.l.b16 %v1625
    %v1662 = vunpack.c.l.b16 %v1626
    %v1663 = vunpack.c.l.b16 %v1627
    %v1664 = vunpack.c.l.b16 %v1628
    %v1665 = vunpack.c.l.b16 %v1629
    %v1666 = vpack.c.b16 %v1651, %v1650
    %v1667 = vpack.c.b16 %v1653, %v1652
    %v1668 = vpack.c.b16 %v1655, %v1654
    %v1669 = vpack.c.b16 %v1657, %v1656
    %v1670 = vpack.c.b16 %v1659, %v1658
    %v1671 = vpack.c.b16 %v1661, %v1660
    %v1672 = vpack.c.b16 %v1663, %v1662
    %v1673 = vpack.c.b16 %v1665, %v1664
    %1682 = vmatpush.bf16.msra.mxu0 %v1673
    %1683 = vmatpush.bf16.msra.mxu0 %v1672
    %1684 = vmatpush.bf16.msra.mxu0 %v1671
    %1685 = vmatpush.bf16.msra.mxu0 %v1670
    %1686 = vmatpush.bf16.msra.mxu0 %v1669
    %1687 = vmatpush.bf16.msra.mxu0 %v1668
    %1688 = vmatpush.bf16.msra.mxu0 %v1667
    %1689 = vmatpush.bf16.msra.mxu0 %v1666
    %1690 = vmatmul.bf16.gmra.mxu0 %v1610
    %v1691 = vpop.f32.mrf.mxu0
    %v1692 = vadd.f32 %v1632, %v1691
    %v1693 = vpop.f32.mrf.mxu0
    %v1694 = vadd.f32 %v1632, %v1693
    %1695 = vmatmul.bf16.gmra.mxu0 %v1611
    %v1696 = vpop.f32.mrf.mxu0
    %v1697 = vadd.f32 %v1632, %v1696
    %v1698 = vpop.f32.mrf.mxu0
    %v1699 = vadd.f32 %v1632, %v1698
    %1700 = vmatmul.bf16.gmra.mxu0 %v1612
    %v1701 = vpop.f32.mrf.mxu0
    %v1702 = vadd.f32 %v1632, %v1701
    %v1703 = vpop.f32.mrf.mxu0
    %v1704 = vadd.f32 %v1632, %v1703
    %1705 = vmatmul.bf16.gmra.mxu0 %v1613
    %v1706 = vpop.f32.mrf.mxu0
    %v1707 = vadd.f32 %v1632, %v1706
    %v1708 = vpop.f32.mrf.mxu0
    %v1709 = vadd.f32 %v1632, %v1708
    %1710 = vdwg.mxu0
    %v1711 = vmax.f32 %v1692, 0.0
    %v1712 = vmax.f32 %v1694, 0.0
    %v1713 = vmax.f32 %v1697, 0.0
    %v1714 = vmax.f32 %v1699, 0.0
    %v1715 = vmax.f32 %v1702, 0.0
    %v1716 = vmax.f32 %v1704, 0.0
    %v1717 = vmax.f32 %v1707, 0.0
    %v1718 = vmax.f32 %v1709, 0.0
    %v1719 = vpack.c.bf16 %v1712, %v1711
    %v1720 = vpack.c.bf16 %v1714, %v1713
    %v1721 = vpack.c.bf16 %v1716, %v1715
    %v1722 = vpack.c.bf16 %v1718, %v1717
    %v1723 = vld [vmem:[%s11] sm:$0xf]
    %v1724 = vld [vmem:[%s11 + $0x4] sm:$0xf]
    %v1725 = vld [vmem:[%s11 + $0x8] sm:$0xf]
    %v1726 = vld [vmem:[%s11 + $0xc] sm:$0xf]
    %v1727 = vld [vmem:[%s11 + $0x10] sm:$0xf]
    %v1728 = vld [vmem:[%s11 + $0x14] sm:$0xf]
    %v1729 = vld [vmem:[%s11 + $0x18] sm:$0xf]
    %v1730 = vld [vmem:[%s11 + $0x1c] sm:$0xf]
    %v1731 = vld [vmem:[%s11 + $0x20] sm:$0xf]
    %v1732 = vld [vmem:[%s11 + $0x24] sm:$0xf]
    %v1733 = vld [vmem:[%s11 + $0x28] sm:$0xf]
    %v1734 = vld [vmem:[%s11 + $0x2c] sm:$0xf]
    %v1735 = vld [vmem:[%s11 + $0x30] sm:$0xf]
    %v1736 = vld [vmem:[%s11 + $0x34] sm:$0xf]
    %v1737 = vld [vmem:[%s11 + $0x38] sm:$0xf]
    %v1738 = vld [vmem:[%s11 + $0x3c] sm:$0xf]
    %v1739 = vld [vmem:[%s12] sm:$0x1]
    %v1741 = vperm.slane %v1739, 0
    %v1759 = vunpack.c.l.b16 %v1723
    %v1760 = vunpack.c.l.b16 %v1724
    %v1761 = vunpack.c.l.b16 %v1725
    %v1762 = vunpack.c.l.b16 %v1726
    %v1763 = vunpack.c.l.b16 %v1727
    %v1764 = vunpack.c.l.b16 %v1728
    %v1765 = vunpack.c.l.b16 %v1729
    %v1766 = vunpack.c.l.b16 %v1730
    %v1767 = vunpack.c.l.b16 %v1731
    %v1768 = vunpack.c.l.b16 %v1732
    %v1769 = vunpack.c.l.b16 %v1733
    %v1770 = vunpack.c.l.b16 %v1734
    %v1771 = vunpack.c.l.b16 %v1735
    %v1772 = vunpack.c.l.b16 %v1736
    %v1773 = vunpack.c.l.b16 %v1737
    %v1774 = vunpack.c.l.b16 %v1738
    %v1775 = vpack.c.b16 %v1760, %v1759
    %v1776 = vpack.c.b16 %v1762, %v1761
    %v1777 = vpack.c.b16 %v1764, %v1763
    %v1778 = vpack.c.b16 %v1766, %v1765
    %v1779 = vpack.c.b16 %v1768, %v1767
    %v1780 = vpack.c.b16 %v1770, %v1769
    %v1781 = vpack.c.b16 %v1772, %v1771
    %v1782 = vpack.c.b16 %v1774, %v1773
    %1791 = vmatpush.bf16.msra.mxu0 %v1782
    %1792 = vmatpush.bf16.msra.mxu0 %v1781
    %1793 = vmatpush.bf16.msra.mxu0 %v1780
    %1794 = vmatpush.bf16.msra.mxu0 %v1779
    %1795 = vmatpush.bf16.msra.mxu0 %v1778
    %1796 = vmatpush.bf16.msra.mxu0 %v1777
    %1797 = vmatpush.bf16.msra.mxu0 %v1776
    %1798 = vmatpush.bf16.msra.mxu0 %v1775
    %1799 = vmatmul.bf16.gmra.mxu0 %v1719
    %v1800 = vpop.f32.mrf.mxu0
    %v1801 = vadd.f32 %v1741, %v1800
    %v1802 = vpop.f32.mrf.mxu0
    %v1803 = vadd.f32 %v1741, %v1802
    %1804 = vmatmul.bf16.gmra.mxu0 %v1720
    %v1805 = vpop.f32.mrf.mxu0
    %v1806 = vadd.f32 %v1741, %v1805
    %v1807 = vpop.f32.mrf.mxu0
    %v1808 = vadd.f32 %v1741, %v1807
    %1809 = vmatmul.bf16.gmra.mxu0 %v1721
    %v1810 = vpop.f32.mrf.mxu0
    %v1811 = vadd.f32 %v1741, %v1810
    %v1812 = vpop.f32.mrf.mxu0
    %v1813 = vadd.f32 %v1741, %v1812
    %1814 = vmatmul.bf16.gmra.mxu0 %v1722
    %v1815 = vpop.f32.mrf.mxu0
    %v1816 = vadd.f32 %v1741, %v1815
    %v1817 = vpop.f32.mrf.mxu0
    %v1818 = vadd.f32 %v1741, %v1817
    %1819 = vdwg.mxu0
    %vm1820 = vcmask 31744
    %1821 = vst.msk [vmem:[%s13] sm:$0xff] %vm1820, %v1801
    %1822 = vst.msk [vmem:[%s13 + $0x8] sm:$0xff] %vm1820, %v1803
    %1823 = vst.msk [vmem:[%s13 + $0x10] sm:$0xff] %vm1820, %v1806
    %1824 = vst.msk [vmem:[%s13 + $0x18] sm:$0xff] %vm1820, %v1808
    %1825 = vst.msk [vmem:[%s13 + $0x20] sm:$0xff] %vm1820, %v1811
    %1826 = vst.msk [vmem:[%s13 + $0x28] sm:$0xff] %vm1820, %v1813
    %1827 = vst.msk [vmem:[%s13 + $0x30] sm:$0xff] %vm1820, %v1816
    %1828 = vst.msk [vmem:[%s13 + $0x38] sm:$0xff] %vm1820, %v1818
    // Predicated region
    $region66: #{tpu_custom_call.1} parent=1 // pred_check
      _
    $region67: #{tpu_custom_call.1} parent=1 // pred_check_branch
      %1830 = sbr.rel (0) target = $region69
    $region68: #{tpu_custom_call.1} parent=1 // pred_region
      _
    $region69: #{tpu_custom_call.1} parent=1 // pred_fallthru
      _
    // Predicated region
    $region70: #{tpu_custom_call.1} parent=1 // pred_check
      _
    $region71: #{tpu_custom_call.1} parent=1 // pred_check_branch
      %1832 = sbr.rel (0) target = $region73
    $region72: #{tpu_custom_call.1} parent=1 // pred_region
      _
    $region73: #{tpu_custom_call.1} parent=1 // pred_fallthru
      _
    %1833 = vsyncpa [#allocation3], 1
    %1834 = vsyncpa [#allocation5], 1

</llo_original>
